<compile_context>
chip_gen: v7x
topology: tpu7x:2x2x1
jax: 0.10.0
libtpu: 0.0.40
codegen_flags: <defaults>
</compile_context>

<pallas_src>
import functools

import jax
import jax.numpy as jnp
from jax.experimental import pallas as pl
from jax.experimental.pallas import tpu as pltpu


# ---------------------------------------------------------------------------
# Fused Pallas kernel: all seq stages + residual + final ReLU
# ---------------------------------------------------------------------------
def _quartnet_block_kernel(lens_ref,     # scalar-prefetch: (N,) int32 in SMEM
                           x_ref,        # (1, C_in, T)
                           *refs,        # dw_pack/pw_pack per stage, res_pack, o_ref
                           k, pad, n_stages):
    o_ref = refs[-1]                     # (1, C_out, T)
    res_ref = refs[-2]                   # (C_out, C_in+1)  folded residual [W | b]
    stage_refs = refs[:2 * n_stages]

    n = pl.program_id(0)
    c_in, t = x_ref.shape[1], x_ref.shape[2]

    # MaskCNN time mask -- built once, reused by every stage.
    length = lens_ref[n]
    t_idx = jax.lax.broadcasted_iota(jnp.int32, (1, t), 1)
    time_mask = t_idx < length

    # "same"-padding validity of each depthwise tap (static per tap offset).
    # TODO(synk): pad = k//2 "same" padding assumes odd k (true for defaults).
    tap_valid = []
    for j in range(k):
        d = j - pad
        tap_valid.append((t_idx >= -d) & (t_idx < t - d))

    x0 = x_ref[0].astype(jnp.float32)                        # (C_in, T)

    h = x0
    for s in range(n_stages):
        dw = stage_refs[2 * s][...].astype(jnp.float32)      # (Cs, K+1): [w | b]
        pw = stage_refs[2 * s + 1][...].astype(jnp.float32)  # (Co, Cs+2): [W_eff|b_eff|bn_b]
        cs_in = dw.shape[0]
        cs_out = pw.shape[0]

        # -- depthwise "same" conv1d (groups == Cs) via lane rotations --
        acc = jnp.zeros((cs_in, t), jnp.float32)
        for j in range(k):
            d = j - pad
            shift = (-d) % t
            xs = pltpu.roll(h, shift=shift, axis=1) if shift else h
            acc = acc + jnp.where(tap_valid[j], xs * dw[:, j:j + 1], 0.0)
        acc = acc + dw[:, k:k + 1]                           # depthwise bias

        # -- pointwise 1x1 conv (BN folded into W/b) as exact-f32 VPU FMAs --
        y = jnp.zeros((cs_out, t), jnp.float32)
        for c in range(cs_in):
            y = y + pw[:, c:c + 1] * acc[c:c + 1, :]
        y = y + pw[:, cs_in:cs_in + 1]                       # folded bias

        # channel_shuffle(groups=1) == identity.
        # MaskCNN then BN: masked positions end up exactly at bn_b.
        bnb = pw[:, cs_in + 1:cs_in + 2]
        h = jnp.where(time_mask, y, bnb)
        # last=True for every seq block (see module note) => no ReLU here.

    # -- residual branch: 1x1 conv + BN (folded), add, final ReLU --
    res = res_ref[...].astype(jnp.float32)                   # (C_out, C_in+1)
    r = jnp.zeros((res.shape[0], t), jnp.float32)
    for c in range(c_in):
        r = r + res[:, c:c + 1] * x0[c:c + 1, :]
    r = r + res[:, c_in:c_in + 1]

    o_ref[0] = jnp.maximum(h + r, 0.0).astype(o_ref.dtype)


# ---------------------------------------------------------------------------
# Wrapper: fold BN, pack per-channel params, single pallas_call
# ---------------------------------------------------------------------------
def quartnet_block(x, percents, params):
    n, c_in, t = x.shape
    seq = params["seq"]
    n_stages = len(seq)
    k = seq[0]["dw_w"].shape[1]
    c_out = seq[-1]["pw_w"].shape[0]

    # MaskCNN: lengths = (T * percents).int()  (truncation toward zero)
    lengths = (t * percents).astype(jnp.int32)

    stage_args, stage_specs = [], []
    for bp in seq:
        ci, co = bp["pw_w"].shape[1], bp["pw_w"].shape[0]
        # pack depthwise weight + bias:  (Ci, K+1)
        dw_pack = jnp.concatenate([bp["dw_w"], bp["dw_b"]], axis=1)
        # fold eval-mode BN into the pointwise conv:  (Co, Ci+2)
        w_eff = bp["bn_s"] * bp["pw_w"]
        b_eff = bp["bn_s"] * bp["pw_b"] + bp["bn_b"]
        pw_pack = jnp.concatenate([w_eff, b_eff, bp["bn_b"]], axis=1)
        stage_args += [dw_pack, pw_pack]
        stage_specs += [
            pl.BlockSpec((ci, k + 1), lambda i, lens: (0, 0)),
            pl.BlockSpec((co, ci + 2), lambda i, lens: (0, 0)),
        ]

    rp = params["reside"]
    rw_eff = rp["bn_s"] * rp["res_w"]
    rb_eff = rp["bn_s"] * rp["res_b"] + rp["bn_b"]
    res_pack = jnp.concatenate([rw_eff, rb_eff], axis=1)      # (C_out, C_in+1)

    kernel = functools.partial(_quartnet_block_kernel,
                               k=k, pad=k // 2, n_stages=n_stages)
    grid_spec = pltpu.PrefetchScalarGridSpec(
        num_scalar_prefetch=1,
        grid=(n,),
        in_specs=[pl.BlockSpec((1, c_in, t), lambda i, lens: (i, 0, 0))]
                 + stage_specs
                 + [pl.BlockSpec((c_out, c_in + 1), lambda i, lens: (0, 0))],
        out_specs=pl.BlockSpec((1, c_out, t), lambda i, lens: (i, 0, 0)),
    )
    return pl.pallas_call(
        kernel,
        out_shape=jax.ShapeDtypeStruct((n, c_out, t), x.dtype),
        grid_spec=grid_spec,
        compiler_params=pltpu.CompilerParams(
            dimension_semantics=("parallel",)),
    )(lengths, x, *stage_args, res_pack)


# ---------------------------------------------------------------------------
# Deterministic parameter init (BN as running-stat scale/bias)
# ---------------------------------------------------------------------------
def _fold_bn(keys, c_out, eps=1e-5):
    gamma = 1.0 + 0.1 * jax.random.normal(keys[0], (c_out, 1), jnp.float32)
    beta = 0.1 * jax.random.normal(keys[1], (c_out, 1), jnp.float32)
    rmean = 0.1 * jax.random.normal(keys[2], (c_out, 1), jnp.float32)
    rvar = 1.0 + 0.1 * jnp.abs(jax.random.normal(keys[3], (c_out, 1), jnp.float32))
    scale = gamma / jnp.sqrt(rvar + eps)
    bias = beta - rmean * scale
    return scale, bias


def init_sep_params(key, c_in, c_out, k):
    ks = jax.random.split(key, 8)
    bn_s, bn_b = _fold_bn(ks[4:8], c_out)
    return dict(
        dw_w=0.2 * jax.random.normal(ks[0], (c_in, k), jnp.float32),
        dw_b=0.1 * jax.random.normal(ks[1], (c_in, 1), jnp.float32),
        pw_w=0.3 * jax.random.normal(ks[2], (c_out, c_in), jnp.float32),
        pw_b=0.1 * jax.random.normal(ks[3], (c_out, 1), jnp.float32),
        bn_s=bn_s, bn_b=bn_b,
    )


def init_reside_params(key, c_in, c_out):
    ks = jax.random.split(key, 6)
    bn_s, bn_b = _fold_bn(ks[2:6], c_out)
    return dict(
        res_w=0.3 * jax.random.normal(ks[0], (c_out, c_in), jnp.float32),
        res_b=0.1 * jax.random.normal(ks[1], (c_out, 1), jnp.float32),
        bn_s=bn_s, bn_b=bn_b,
    )


# ---------------------------------------------------------------------------
# Pure-JAX reference (unfolded BN, explicit mask) for the correctness check
# ---------------------------------------------------------------------------
def _ref_sep(x, lengths, p):
    n, c, t = x.shape
    k = p["dw_w"].shape[1]
    pad = k // 2
    xp = jnp.pad(x, ((0, 0), (0, 0), (pad, pad)))
    out = jnp.zeros((n, c, t), jnp.float32)
    for j in range(k):
        out = out + xp[:, :, j:j + t] * p["dw_w"][None, :, j:j + 1]
    out = out + p["dw_b"][None]
    y = jnp.einsum("oc,nct->not", p["pw_w"], out,
                   precision=jax.lax.Precision.HIGHEST) + p["pw_b"][None]
    t_idx = jnp.arange(t)[None, None, :]
    y = jnp.where(t_idx < lengths[:, None, None], y, 0.0)
    return y * p["bn_s"][None] + p["bn_b"][None]


def _ref_quartnet(x, percents, params):
    t = x.shape[2]
    lengths = (t * percents).astype(jnp.int32)
    h = x
    for bp in params["seq"]:
        h = _ref_sep(h, lengths, bp)
    rp = params["reside"]
    r = jnp.einsum("oc,nct->not", rp["res_w"], x,
                   precision=jax.lax.Precision.HIGHEST) + rp["res_b"][None]
    r = r * rp["bn_s"][None] + rp["bn_b"][None]
    return jnp.maximum(h + r, 0.0)


# ---------------------------------------------------------------------------
if __name__ == "__main__":
    N, C_IN, C_OUT, T, K, REPEAT = 2, 4, 8, 128, 9, 3

    key = jax.random.PRNGKey(0)
    kx, kp, *kblocks = jax.random.split(key, 3 + REPEAT)

    x = jax.random.normal(kx, (N, C_IN, T), jnp.float32)
    percents = jnp.array([0.75, 0.5], jnp.float32)

    seq_params = []
    for i in range(REPEAT - 1):
        seq_params.append(init_sep_params(kblocks[i], C_IN, C_IN, K))
    seq_params.append(init_sep_params(kblocks[REPEAT - 1], C_IN, C_OUT, K))
    params = dict(seq=seq_params, reside=init_reside_params(kp, C_IN, C_OUT))

    out = quartnet_block(x, percents, params)
    out = jax.block_until_ready(out)

    ref = _ref_quartnet(x, percents, params)
    assert out.shape == (N, C_OUT, T)
    assert jnp.allclose(out, ref, rtol=1e-3, atol=1e-3), (
        float(jnp.max(jnp.abs(out - ref))))

    print("KERNEL_OK")
</pallas_src>

<mosaic_0001>
module attributes {stable_mosaic.version = 11 : i64} {
  func.func @_quartnet_block_kernel(%arg0: i32, %arg1: memref<2xi32, #tpu.memory_space<smem>>, %arg2: memref<1x4x128xf32, #tpu.memory_space<vmem>>, %arg3: memref<4x10xf32, #tpu.memory_space<vmem>>, %arg4: memref<4x6xf32, #tpu.memory_space<vmem>>, %arg5: memref<4x10xf32, #tpu.memory_space<vmem>>, %arg6: memref<4x6xf32, #tpu.memory_space<vmem>>, %arg7: memref<4x10xf32, #tpu.memory_space<vmem>>, %arg8: memref<8x6xf32, #tpu.memory_space<vmem>>, %arg9: memref<8x5xf32, #tpu.memory_space<vmem>>, %arg10: memref<1x8x128xf32, #tpu.memory_space<vmem>>) attributes {dimension_semantics = [#tpu.dimension_semantics<parallel>], iteration_bounds = array<i64: 2>, scalar_prefetch = 1 : i64, scratch_operands = 0 : i64, tpu.core_type = #tpu.core_type<tc>, window_params = [{transform_indices = @transform_0, window_bounds = array<i64: 1, 4, 128>}, {pipeline_mode = #tpu.pipeline_mode<synchronous>, transform_indices = @transform_1, window_bounds = array<i64: 4, 10>}, {pipeline_mode = #tpu.pipeline_mode<synchronous>, transform_indices = @transform_2, window_bounds = array<i64: 4, 6>}, {pipeline_mode = #tpu.pipeline_mode<synchronous>, transform_indices = @transform_3, window_bounds = array<i64: 4, 10>}, {pipeline_mode = #tpu.pipeline_mode<synchronous>, transform_indices = @transform_4, window_bounds = array<i64: 4, 6>}, {pipeline_mode = #tpu.pipeline_mode<synchronous>, transform_indices = @transform_5, window_bounds = array<i64: 4, 10>}, {pipeline_mode = #tpu.pipeline_mode<synchronous>, transform_indices = @transform_6, window_bounds = array<i64: 8, 6>}, {pipeline_mode = #tpu.pipeline_mode<synchronous>, transform_indices = @transform_7, window_bounds = array<i64: 8, 5>}, {transform_indices = @transform_8, window_bounds = array<i64: 1, 8, 128>}]} {
    %0 = arith.index_cast %arg0 : i32 to index
    %1 = memref.load %arg1[%0] : memref<2xi32, #tpu.memory_space<smem>>
    %2 = tpu.iota {dimensions = array<i32: 1>} : vector<1x128xi32>
    %3 = vector.broadcast %1 : i32 to vector<1x128xi32>
    %4 = arith.cmpi slt, %2, %3 : vector<1x128xi32>
    %c4_i32 = arith.constant 4 : i32
    %5 = vector.broadcast %c4_i32 : i32 to vector<1x128xi32>
    %6 = arith.cmpi sge, %2, %5 : vector<1x128xi32>
    %c132_i32 = arith.constant 132 : i32
    %7 = vector.broadcast %c132_i32 : i32 to vector<1x128xi32>
    %8 = arith.cmpi slt, %2, %7 : vector<1x128xi32>
    %9 = arith.andi %6, %8 : vector<1x128xi1>
    %c3_i32 = arith.constant 3 : i32
    %10 = vector.broadcast %c3_i32 : i32 to vector<1x128xi32>
    %11 = arith.cmpi sge, %2, %10 : vector<1x128xi32>
    %c131_i32 = arith.constant 131 : i32
    %12 = vector.broadcast %c131_i32 : i32 to vector<1x128xi32>
    %13 = arith.cmpi slt, %2, %12 : vector<1x128xi32>
    %14 = arith.andi %11, %13 : vector<1x128xi1>
    %c2_i32 = arith.constant 2 : i32
    %15 = vector.broadcast %c2_i32 : i32 to vector<1x128xi32>
    %16 = arith.cmpi sge, %2, %15 : vector<1x128xi32>
    %c130_i32 = arith.constant 130 : i32
    %17 = vector.broadcast %c130_i32 : i32 to vector<1x128xi32>
    %18 = arith.cmpi slt, %2, %17 : vector<1x128xi32>
    %19 = arith.andi %16, %18 : vector<1x128xi1>
    %c1_i32 = arith.constant 1 : i32
    %20 = vector.broadcast %c1_i32 : i32 to vector<1x128xi32>
    %21 = arith.cmpi sge, %2, %20 : vector<1x128xi32>
    %c129_i32 = arith.constant 129 : i32
    %22 = vector.broadcast %c129_i32 : i32 to vector<1x128xi32>
    %23 = arith.cmpi slt, %2, %22 : vector<1x128xi32>
    %24 = arith.andi %21, %23 : vector<1x128xi1>
    %c0_i32 = arith.constant 0 : i32
    %25 = vector.broadcast %c0_i32 : i32 to vector<1x128xi32>
    %26 = arith.cmpi sge, %2, %25 : vector<1x128xi32>
    %c128_i32 = arith.constant 128 : i32
    %27 = vector.broadcast %c128_i32 : i32 to vector<1x128xi32>
    %28 = arith.cmpi slt, %2, %27 : vector<1x128xi32>
    %29 = arith.andi %26, %28 : vector<1x128xi1>
    %c-1_i32 = arith.constant -1 : i32
    %30 = vector.broadcast %c-1_i32 : i32 to vector<1x128xi32>
    %31 = arith.cmpi sge, %2, %30 : vector<1x128xi32>
    %c127_i32 = arith.constant 127 : i32
    %32 = vector.broadcast %c127_i32 : i32 to vector<1x128xi32>
    %33 = arith.cmpi slt, %2, %32 : vector<1x128xi32>
    %34 = arith.andi %31, %33 : vector<1x128xi1>
    %c-2_i32 = arith.constant -2 : i32
    %35 = vector.broadcast %c-2_i32 : i32 to vector<1x128xi32>
    %36 = arith.cmpi sge, %2, %35 : vector<1x128xi32>
    %c126_i32 = arith.constant 126 : i32
    %37 = vector.broadcast %c126_i32 : i32 to vector<1x128xi32>
    %38 = arith.cmpi slt, %2, %37 : vector<1x128xi32>
    %39 = arith.andi %36, %38 : vector<1x128xi1>
    %c-3_i32 = arith.constant -3 : i32
    %40 = vector.broadcast %c-3_i32 : i32 to vector<1x128xi32>
    %41 = arith.cmpi sge, %2, %40 : vector<1x128xi32>
    %c125_i32 = arith.constant 125 : i32
    %42 = vector.broadcast %c125_i32 : i32 to vector<1x128xi32>
    %43 = arith.cmpi slt, %2, %42 : vector<1x128xi32>
    %44 = arith.andi %41, %43 : vector<1x128xi1>
    %c-4_i32 = arith.constant -4 : i32
    %45 = vector.broadcast %c-4_i32 : i32 to vector<1x128xi32>
    %46 = arith.cmpi sge, %2, %45 : vector<1x128xi32>
    %c124_i32 = arith.constant 124 : i32
    %47 = vector.broadcast %c124_i32 : i32 to vector<1x128xi32>
    %48 = arith.cmpi slt, %2, %47 : vector<1x128xi32>
    %49 = arith.andi %46, %48 : vector<1x128xi1>
    %c0 = arith.constant 0 : index
    %c0_0 = arith.constant 0 : index
    %c0_1 = arith.constant 0 : index
    %50 = vector.load %arg2[%c0, %c0_0, %c0_1] : memref<1x4x128xf32, #tpu.memory_space<vmem>>, vector<1x4x128xf32>
    %51 = vector.shape_cast %50 : vector<1x4x128xf32> to vector<4x128xf32>
    %c0_2 = arith.constant 0 : index
    %c0_3 = arith.constant 0 : index
    %52 = vector.load %arg3[%c0_2, %c0_3] : memref<4x10xf32, #tpu.memory_space<vmem>>, vector<4x10xf32>
    %c0_4 = arith.constant 0 : index
    %c0_5 = arith.constant 0 : index
    %53 = vector.load %arg4[%c0_4, %c0_5] : memref<4x6xf32, #tpu.memory_space<vmem>>, vector<4x6xf32>
    %cst = arith.constant 0.000000e+00 : f32
    %54 = vector.broadcast %cst : f32 to vector<4x128xf32>
    %c4_i32_6 = arith.constant 4 : i32
    %55 = tpu.dynamic_rotate %51 by %c4_i32_6 dim 1 : vector<4x128xf32>, i32 -> vector<4x128xf32>
    %56 = vector.extract_strided_slice %52 {offsets = [0, 0], sizes = [4, 1], strides = [1, 1]} : vector<4x10xf32> to vector<4x1xf32>
    %57 = vector.broadcast %56 : vector<4x1xf32> to vector<4x128xf32>
    %58 = arith.mulf %55, %57 : vector<4x128xf32>
    %cst_7 = arith.constant 0.000000e+00 : f32
    %59 = vector.shape_cast %9 : vector<1x128xi1> to vector<1x128xi1>
    %60 = vector.broadcast %59 : vector<1x128xi1> to vector<4x128xi1>
    %61 = vector.broadcast %cst_7 : f32 to vector<4x128xf32>
    %62 = arith.select %60, %58, %61 : vector<4x128xi1>, vector<4x128xf32>
    %63 = arith.addf %54, %62 : vector<4x128xf32>
    %c3_i32_8 = arith.constant 3 : i32
    %64 = tpu.dynamic_rotate %51 by %c3_i32_8 dim 1 : vector<4x128xf32>, i32 -> vector<4x128xf32>
    %65 = vector.extract_strided_slice %52 {offsets = [0, 1], sizes = [4, 1], strides = [1, 1]} : vector<4x10xf32> to vector<4x1xf32>
    %66 = vector.broadcast %65 : vector<4x1xf32> to vector<4x128xf32>
    %67 = arith.mulf %64, %66 : vector<4x128xf32>
    %cst_9 = arith.constant 0.000000e+00 : f32
    %68 = vector.shape_cast %14 : vector<1x128xi1> to vector<1x128xi1>
    %69 = vector.broadcast %68 : vector<1x128xi1> to vector<4x128xi1>
    %70 = vector.broadcast %cst_9 : f32 to vector<4x128xf32>
    %71 = arith.select %69, %67, %70 : vector<4x128xi1>, vector<4x128xf32>
    %72 = arith.addf %63, %71 : vector<4x128xf32>
    %c2_i32_10 = arith.constant 2 : i32
    %73 = tpu.dynamic_rotate %51 by %c2_i32_10 dim 1 : vector<4x128xf32>, i32 -> vector<4x128xf32>
    %74 = vector.extract_strided_slice %52 {offsets = [0, 2], sizes = [4, 1], strides = [1, 1]} : vector<4x10xf32> to vector<4x1xf32>
    %75 = vector.broadcast %74 : vector<4x1xf32> to vector<4x128xf32>
    %76 = arith.mulf %73, %75 : vector<4x128xf32>
    %cst_11 = arith.constant 0.000000e+00 : f32
    %77 = vector.shape_cast %19 : vector<1x128xi1> to vector<1x128xi1>
    %78 = vector.broadcast %77 : vector<1x128xi1> to vector<4x128xi1>
    %79 = vector.broadcast %cst_11 : f32 to vector<4x128xf32>
    %80 = arith.select %78, %76, %79 : vector<4x128xi1>, vector<4x128xf32>
    %81 = arith.addf %72, %80 : vector<4x128xf32>
    %c1_i32_12 = arith.constant 1 : i32
    %82 = tpu.dynamic_rotate %51 by %c1_i32_12 dim 1 : vector<4x128xf32>, i32 -> vector<4x128xf32>
    %83 = vector.extract_strided_slice %52 {offsets = [0, 3], sizes = [4, 1], strides = [1, 1]} : vector<4x10xf32> to vector<4x1xf32>
    %84 = vector.broadcast %83 : vector<4x1xf32> to vector<4x128xf32>
    %85 = arith.mulf %82, %84 : vector<4x128xf32>
    %cst_13 = arith.constant 0.000000e+00 : f32
    %86 = vector.shape_cast %24 : vector<1x128xi1> to vector<1x128xi1>
    %87 = vector.broadcast %86 : vector<1x128xi1> to vector<4x128xi1>
    %88 = vector.broadcast %cst_13 : f32 to vector<4x128xf32>
    %89 = arith.select %87, %85, %88 : vector<4x128xi1>, vector<4x128xf32>
    %90 = arith.addf %81, %89 : vector<4x128xf32>
    %91 = vector.extract_strided_slice %52 {offsets = [0, 4], sizes = [4, 1], strides = [1, 1]} : vector<4x10xf32> to vector<4x1xf32>
    %92 = vector.broadcast %91 : vector<4x1xf32> to vector<4x128xf32>
    %93 = arith.mulf %51, %92 : vector<4x128xf32>
    %cst_14 = arith.constant 0.000000e+00 : f32
    %94 = vector.shape_cast %29 : vector<1x128xi1> to vector<1x128xi1>
    %95 = vector.broadcast %94 : vector<1x128xi1> to vector<4x128xi1>
    %96 = vector.broadcast %cst_14 : f32 to vector<4x128xf32>
    %97 = arith.select %95, %93, %96 : vector<4x128xi1>, vector<4x128xf32>
    %98 = arith.addf %90, %97 : vector<4x128xf32>
    %c127_i32_15 = arith.constant 127 : i32
    %99 = tpu.dynamic_rotate %51 by %c127_i32_15 dim 1 : vector<4x128xf32>, i32 -> vector<4x128xf32>
    %100 = vector.extract_strided_slice %52 {offsets = [0, 5], sizes = [4, 1], strides = [1, 1]} : vector<4x10xf32> to vector<4x1xf32>
    %101 = vector.broadcast %100 : vector<4x1xf32> to vector<4x128xf32>
    %102 = arith.mulf %99, %101 : vector<4x128xf32>
    %cst_16 = arith.constant 0.000000e+00 : f32
    %103 = vector.shape_cast %34 : vector<1x128xi1> to vector<1x128xi1>
    %104 = vector.broadcast %103 : vector<1x128xi1> to vector<4x128xi1>
    %105 = vector.broadcast %cst_16 : f32 to vector<4x128xf32>
    %106 = arith.select %104, %102, %105 : vector<4x128xi1>, vector<4x128xf32>
    %107 = arith.addf %98, %106 : vector<4x128xf32>
    %c126_i32_17 = arith.constant 126 : i32
    %108 = tpu.dynamic_rotate %51 by %c126_i32_17 dim 1 : vector<4x128xf32>, i32 -> vector<4x128xf32>
    %109 = vector.extract_strided_slice %52 {offsets = [0, 6], sizes = [4, 1], strides = [1, 1]} : vector<4x10xf32> to vector<4x1xf32>
    %110 = vector.broadcast %109 : vector<4x1xf32> to vector<4x128xf32>
    %111 = arith.mulf %108, %110 : vector<4x128xf32>
    %cst_18 = arith.constant 0.000000e+00 : f32
    %112 = vector.shape_cast %39 : vector<1x128xi1> to vector<1x128xi1>
    %113 = vector.broadcast %112 : vector<1x128xi1> to vector<4x128xi1>
    %114 = vector.broadcast %cst_18 : f32 to vector<4x128xf32>
    %115 = arith.select %113, %111, %114 : vector<4x128xi1>, vector<4x128xf32>
    %116 = arith.addf %107, %115 : vector<4x128xf32>
    %c125_i32_19 = arith.constant 125 : i32
    %117 = tpu.dynamic_rotate %51 by %c125_i32_19 dim 1 : vector<4x128xf32>, i32 -> vector<4x128xf32>
    %118 = vector.extract_strided_slice %52 {offsets = [0, 7], sizes = [4, 1], strides = [1, 1]} : vector<4x10xf32> to vector<4x1xf32>
    %119 = vector.broadcast %118 : vector<4x1xf32> to vector<4x128xf32>
    %120 = arith.mulf %117, %119 : vector<4x128xf32>
    %cst_20 = arith.constant 0.000000e+00 : f32
    %121 = vector.shape_cast %44 : vector<1x128xi1> to vector<1x128xi1>
    %122 = vector.broadcast %121 : vector<1x128xi1> to vector<4x128xi1>
    %123 = vector.broadcast %cst_20 : f32 to vector<4x128xf32>
    %124 = arith.select %122, %120, %123 : vector<4x128xi1>, vector<4x128xf32>
    %125 = arith.addf %116, %124 : vector<4x128xf32>
    %c124_i32_21 = arith.constant 124 : i32
    %126 = tpu.dynamic_rotate %51 by %c124_i32_21 dim 1 : vector<4x128xf32>, i32 -> vector<4x128xf32>
    %127 = vector.extract_strided_slice %52 {offsets = [0, 8], sizes = [4, 1], strides = [1, 1]} : vector<4x10xf32> to vector<4x1xf32>
    %128 = vector.broadcast %127 : vector<4x1xf32> to vector<4x128xf32>
    %129 = arith.mulf %126, %128 : vector<4x128xf32>
    %cst_22 = arith.constant 0.000000e+00 : f32
    %130 = vector.shape_cast %49 : vector<1x128xi1> to vector<1x128xi1>
    %131 = vector.broadcast %130 : vector<1x128xi1> to vector<4x128xi1>
    %132 = vector.broadcast %cst_22 : f32 to vector<4x128xf32>
    %133 = arith.select %131, %129, %132 : vector<4x128xi1>, vector<4x128xf32>
    %134 = arith.addf %125, %133 : vector<4x128xf32>
    %135 = vector.extract_strided_slice %52 {offsets = [0, 9], sizes = [4, 1], strides = [1, 1]} : vector<4x10xf32> to vector<4x1xf32>
    %136 = vector.broadcast %135 : vector<4x1xf32> to vector<4x128xf32>
    %137 = arith.addf %134, %136 : vector<4x128xf32>
    %cst_23 = arith.constant 0.000000e+00 : f32
    %138 = vector.broadcast %cst_23 : f32 to vector<4x128xf32>
    %139 = vector.extract_strided_slice %53 {offsets = [0, 0], sizes = [4, 1], strides = [1, 1]} : vector<4x6xf32> to vector<4x1xf32>
    %140 = vector.extract_strided_slice %137 {offsets = [0, 0], sizes = [1, 128], strides = [1, 1]} : vector<4x128xf32> to vector<1x128xf32>
    %141 = vector.broadcast %139 : vector<4x1xf32> to vector<4x128xf32>
    %142 = vector.broadcast %140 : vector<1x128xf32> to vector<4x128xf32>
    %143 = arith.mulf %141, %142 : vector<4x128xf32>
    %144 = arith.addf %138, %143 : vector<4x128xf32>
    %145 = vector.extract_strided_slice %53 {offsets = [0, 1], sizes = [4, 1], strides = [1, 1]} : vector<4x6xf32> to vector<4x1xf32>
    %146 = vector.extract_strided_slice %137 {offsets = [1, 0], sizes = [1, 128], strides = [1, 1]} : vector<4x128xf32> to vector<1x128xf32>
    %147 = vector.broadcast %145 : vector<4x1xf32> to vector<4x128xf32>
    %148 = vector.broadcast %146 : vector<1x128xf32> to vector<4x128xf32>
    %149 = arith.mulf %147, %148 : vector<4x128xf32>
    %150 = arith.addf %144, %149 : vector<4x128xf32>
    %151 = vector.extract_strided_slice %53 {offsets = [0, 2], sizes = [4, 1], strides = [1, 1]} : vector<4x6xf32> to vector<4x1xf32>
    %152 = vector.extract_strided_slice %137 {offsets = [2, 0], sizes = [1, 128], strides = [1, 1]} : vector<4x128xf32> to vector<1x128xf32>
    %153 = vector.broadcast %151 : vector<4x1xf32> to vector<4x128xf32>
    %154 = vector.broadcast %152 : vector<1x128xf32> to vector<4x128xf32>
    %155 = arith.mulf %153, %154 : vector<4x128xf32>
    %156 = arith.addf %150, %155 : vector<4x128xf32>
    %157 = vector.extract_strided_slice %53 {offsets = [0, 3], sizes = [4, 1], strides = [1, 1]} : vector<4x6xf32> to vector<4x1xf32>
    %158 = vector.extract_strided_slice %137 {offsets = [3, 0], sizes = [1, 128], strides = [1, 1]} : vector<4x128xf32> to vector<1x128xf32>
    %159 = vector.broadcast %157 : vector<4x1xf32> to vector<4x128xf32>
    %160 = vector.broadcast %158 : vector<1x128xf32> to vector<4x128xf32>
    %161 = arith.mulf %159, %160 : vector<4x128xf32>
    %162 = arith.addf %156, %161 : vector<4x128xf32>
    %163 = vector.extract_strided_slice %53 {offsets = [0, 4], sizes = [4, 1], strides = [1, 1]} : vector<4x6xf32> to vector<4x1xf32>
    %164 = vector.broadcast %163 : vector<4x1xf32> to vector<4x128xf32>
    %165 = arith.addf %162, %164 : vector<4x128xf32>
    %166 = vector.extract_strided_slice %53 {offsets = [0, 5], sizes = [4, 1], strides = [1, 1]} : vector<4x6xf32> to vector<4x1xf32>
    %167 = vector.shape_cast %4 : vector<1x128xi1> to vector<1x128xi1>
    %168 = vector.broadcast %167 : vector<1x128xi1> to vector<4x128xi1>
    %169 = vector.shape_cast %166 : vector<4x1xf32> to vector<4x1xf32>
    %170 = vector.broadcast %169 : vector<4x1xf32> to vector<4x128xf32>
    %171 = arith.select %168, %165, %170 : vector<4x128xi1>, vector<4x128xf32>
    %c0_24 = arith.constant 0 : index
    %c0_25 = arith.constant 0 : index
    %172 = vector.load %arg5[%c0_24, %c0_25] : memref<4x10xf32, #tpu.memory_space<vmem>>, vector<4x10xf32>
    %c0_26 = arith.constant 0 : index
    %c0_27 = arith.constant 0 : index
    %173 = vector.load %arg6[%c0_26, %c0_27] : memref<4x6xf32, #tpu.memory_space<vmem>>, vector<4x6xf32>
    %cst_28 = arith.constant 0.000000e+00 : f32
    %174 = vector.broadcast %cst_28 : f32 to vector<4x128xf32>
    %c4_i32_29 = arith.constant 4 : i32
    %175 = tpu.dynamic_rotate %171 by %c4_i32_29 dim 1 : vector<4x128xf32>, i32 -> vector<4x128xf32>
    %176 = vector.extract_strided_slice %172 {offsets = [0, 0], sizes = [4, 1], strides = [1, 1]} : vector<4x10xf32> to vector<4x1xf32>
    %177 = vector.broadcast %176 : vector<4x1xf32> to vector<4x128xf32>
    %178 = arith.mulf %175, %177 : vector<4x128xf32>
    %cst_30 = arith.constant 0.000000e+00 : f32
    %179 = vector.shape_cast %9 : vector<1x128xi1> to vector<1x128xi1>
    %180 = vector.broadcast %179 : vector<1x128xi1> to vector<4x128xi1>
    %181 = vector.broadcast %cst_30 : f32 to vector<4x128xf32>
    %182 = arith.select %180, %178, %181 : vector<4x128xi1>, vector<4x128xf32>
    %183 = arith.addf %174, %182 : vector<4x128xf32>
    %c3_i32_31 = arith.constant 3 : i32
    %184 = tpu.dynamic_rotate %171 by %c3_i32_31 dim 1 : vector<4x128xf32>, i32 -> vector<4x128xf32>
    %185 = vector.extract_strided_slice %172 {offsets = [0, 1], sizes = [4, 1], strides = [1, 1]} : vector<4x10xf32> to vector<4x1xf32>
    %186 = vector.broadcast %185 : vector<4x1xf32> to vector<4x128xf32>
    %187 = arith.mulf %184, %186 : vector<4x128xf32>
    %cst_32 = arith.constant 0.000000e+00 : f32
    %188 = vector.shape_cast %14 : vector<1x128xi1> to vector<1x128xi1>
    %189 = vector.broadcast %188 : vector<1x128xi1> to vector<4x128xi1>
    %190 = vector.broadcast %cst_32 : f32 to vector<4x128xf32>
    %191 = arith.select %189, %187, %190 : vector<4x128xi1>, vector<4x128xf32>
    %192 = arith.addf %183, %191 : vector<4x128xf32>
    %c2_i32_33 = arith.constant 2 : i32
    %193 = tpu.dynamic_rotate %171 by %c2_i32_33 dim 1 : vector<4x128xf32>, i32 -> vector<4x128xf32>
    %194 = vector.extract_strided_slice %172 {offsets = [0, 2], sizes = [4, 1], strides = [1, 1]} : vector<4x10xf32> to vector<4x1xf32>
    %195 = vector.broadcast %194 : vector<4x1xf32> to vector<4x128xf32>
    %196 = arith.mulf %193, %195 : vector<4x128xf32>
    %cst_34 = arith.constant 0.000000e+00 : f32
    %197 = vector.shape_cast %19 : vector<1x128xi1> to vector<1x128xi1>
    %198 = vector.broadcast %197 : vector<1x128xi1> to vector<4x128xi1>
    %199 = vector.broadcast %cst_34 : f32 to vector<4x128xf32>
    %200 = arith.select %198, %196, %199 : vector<4x128xi1>, vector<4x128xf32>
    %201 = arith.addf %192, %200 : vector<4x128xf32>
    %c1_i32_35 = arith.constant 1 : i32
    %202 = tpu.dynamic_rotate %171 by %c1_i32_35 dim 1 : vector<4x128xf32>, i32 -> vector<4x128xf32>
    %203 = vector.extract_strided_slice %172 {offsets = [0, 3], sizes = [4, 1], strides = [1, 1]} : vector<4x10xf32> to vector<4x1xf32>
    %204 = vector.broadcast %203 : vector<4x1xf32> to vector<4x128xf32>
    %205 = arith.mulf %202, %204 : vector<4x128xf32>
    %cst_36 = arith.constant 0.000000e+00 : f32
    %206 = vector.shape_cast %24 : vector<1x128xi1> to vector<1x128xi1>
    %207 = vector.broadcast %206 : vector<1x128xi1> to vector<4x128xi1>
    %208 = vector.broadcast %cst_36 : f32 to vector<4x128xf32>
    %209 = arith.select %207, %205, %208 : vector<4x128xi1>, vector<4x128xf32>
    %210 = arith.addf %201, %209 : vector<4x128xf32>
    %211 = vector.extract_strided_slice %172 {offsets = [0, 4], sizes = [4, 1], strides = [1, 1]} : vector<4x10xf32> to vector<4x1xf32>
    %212 = vector.broadcast %211 : vector<4x1xf32> to vector<4x128xf32>
    %213 = arith.mulf %171, %212 : vector<4x128xf32>
    %cst_37 = arith.constant 0.000000e+00 : f32
    %214 = vector.shape_cast %29 : vector<1x128xi1> to vector<1x128xi1>
    %215 = vector.broadcast %214 : vector<1x128xi1> to vector<4x128xi1>
    %216 = vector.broadcast %cst_37 : f32 to vector<4x128xf32>
    %217 = arith.select %215, %213, %216 : vector<4x128xi1>, vector<4x128xf32>
    %218 = arith.addf %210, %217 : vector<4x128xf32>
    %c127_i32_38 = arith.constant 127 : i32
    %219 = tpu.dynamic_rotate %171 by %c127_i32_38 dim 1 : vector<4x128xf32>, i32 -> vector<4x128xf32>
    %220 = vector.extract_strided_slice %172 {offsets = [0, 5], sizes = [4, 1], strides = [1, 1]} : vector<4x10xf32> to vector<4x1xf32>
    %221 = vector.broadcast %220 : vector<4x1xf32> to vector<4x128xf32>
    %222 = arith.mulf %219, %221 : vector<4x128xf32>
    %cst_39 = arith.constant 0.000000e+00 : f32
    %223 = vector.shape_cast %34 : vector<1x128xi1> to vector<1x128xi1>
    %224 = vector.broadcast %223 : vector<1x128xi1> to vector<4x128xi1>
    %225 = vector.broadcast %cst_39 : f32 to vector<4x128xf32>
    %226 = arith.select %224, %222, %225 : vector<4x128xi1>, vector<4x128xf32>
    %227 = arith.addf %218, %226 : vector<4x128xf32>
    %c126_i32_40 = arith.constant 126 : i32
    %228 = tpu.dynamic_rotate %171 by %c126_i32_40 dim 1 : vector<4x128xf32>, i32 -> vector<4x128xf32>
    %229 = vector.extract_strided_slice %172 {offsets = [0, 6], sizes = [4, 1], strides = [1, 1]} : vector<4x10xf32> to vector<4x1xf32>
    %230 = vector.broadcast %229 : vector<4x1xf32> to vector<4x128xf32>
    %231 = arith.mulf %228, %230 : vector<4x128xf32>
    %cst_41 = arith.constant 0.000000e+00 : f32
    %232 = vector.shape_cast %39 : vector<1x128xi1> to vector<1x128xi1>
    %233 = vector.broadcast %232 : vector<1x128xi1> to vector<4x128xi1>
    %234 = vector.broadcast %cst_41 : f32 to vector<4x128xf32>
    %235 = arith.select %233, %231, %234 : vector<4x128xi1>, vector<4x128xf32>
    %236 = arith.addf %227, %235 : vector<4x128xf32>
    %c125_i32_42 = arith.constant 125 : i32
    %237 = tpu.dynamic_rotate %171 by %c125_i32_42 dim 1 : vector<4x128xf32>, i32 -> vector<4x128xf32>
    %238 = vector.extract_strided_slice %172 {offsets = [0, 7], sizes = [4, 1], strides = [1, 1]} : vector<4x10xf32> to vector<4x1xf32>
    %239 = vector.broadcast %238 : vector<4x1xf32> to vector<4x128xf32>
    %240 = arith.mulf %237, %239 : vector<4x128xf32>
    %cst_43 = arith.constant 0.000000e+00 : f32
    %241 = vector.shape_cast %44 : vector<1x128xi1> to vector<1x128xi1>
    %242 = vector.broadcast %241 : vector<1x128xi1> to vector<4x128xi1>
    %243 = vector.broadcast %cst_43 : f32 to vector<4x128xf32>
    %244 = arith.select %242, %240, %243 : vector<4x128xi1>, vector<4x128xf32>
    %245 = arith.addf %236, %244 : vector<4x128xf32>
    %c124_i32_44 = arith.constant 124 : i32
    %246 = tpu.dynamic_rotate %171 by %c124_i32_44 dim 1 : vector<4x128xf32>, i32 -> vector<4x128xf32>
    %247 = vector.extract_strided_slice %172 {offsets = [0, 8], sizes = [4, 1], strides = [1, 1]} : vector<4x10xf32> to vector<4x1xf32>
    %248 = vector.broadcast %247 : vector<4x1xf32> to vector<4x128xf32>
    %249 = arith.mulf %246, %248 : vector<4x128xf32>
    %cst_45 = arith.constant 0.000000e+00 : f32
    %250 = vector.shape_cast %49 : vector<1x128xi1> to vector<1x128xi1>
    %251 = vector.broadcast %250 : vector<1x128xi1> to vector<4x128xi1>
    %252 = vector.broadcast %cst_45 : f32 to vector<4x128xf32>
    %253 = arith.select %251, %249, %252 : vector<4x128xi1>, vector<4x128xf32>
    %254 = arith.addf %245, %253 : vector<4x128xf32>
    %255 = vector.extract_strided_slice %172 {offsets = [0, 9], sizes = [4, 1], strides = [1, 1]} : vector<4x10xf32> to vector<4x1xf32>
    %256 = vector.broadcast %255 : vector<4x1xf32> to vector<4x128xf32>
    %257 = arith.addf %254, %256 : vector<4x128xf32>
    %cst_46 = arith.constant 0.000000e+00 : f32
    %258 = vector.broadcast %cst_46 : f32 to vector<4x128xf32>
    %259 = vector.extract_strided_slice %173 {offsets = [0, 0], sizes = [4, 1], strides = [1, 1]} : vector<4x6xf32> to vector<4x1xf32>
    %260 = vector.extract_strided_slice %257 {offsets = [0, 0], sizes = [1, 128], strides = [1, 1]} : vector<4x128xf32> to vector<1x128xf32>
    %261 = vector.broadcast %259 : vector<4x1xf32> to vector<4x128xf32>
    %262 = vector.broadcast %260 : vector<1x128xf32> to vector<4x128xf32>
    %263 = arith.mulf %261, %262 : vector<4x128xf32>
    %264 = arith.addf %258, %263 : vector<4x128xf32>
    %265 = vector.extract_strided_slice %173 {offsets = [0, 1], sizes = [4, 1], strides = [1, 1]} : vector<4x6xf32> to vector<4x1xf32>
    %266 = vector.extract_strided_slice %257 {offsets = [1, 0], sizes = [1, 128], strides = [1, 1]} : vector<4x128xf32> to vector<1x128xf32>
    %267 = vector.broadcast %265 : vector<4x1xf32> to vector<4x128xf32>
    %268 = vector.broadcast %266 : vector<1x128xf32> to vector<4x128xf32>
    %269 = arith.mulf %267, %268 : vector<4x128xf32>
    %270 = arith.addf %264, %269 : vector<4x128xf32>
    %271 = vector.extract_strided_slice %173 {offsets = [0, 2], sizes = [4, 1], strides = [1, 1]} : vector<4x6xf32> to vector<4x1xf32>
    %272 = vector.extract_strided_slice %257 {offsets = [2, 0], sizes = [1, 128], strides = [1, 1]} : vector<4x128xf32> to vector<1x128xf32>
    %273 = vector.broadcast %271 : vector<4x1xf32> to vector<4x128xf32>
    %274 = vector.broadcast %272 : vector<1x128xf32> to vector<4x128xf32>
    %275 = arith.mulf %273, %274 : vector<4x128xf32>
    %276 = arith.addf %270, %275 : vector<4x128xf32>
    %277 = vector.extract_strided_slice %173 {offsets = [0, 3], sizes = [4, 1], strides = [1, 1]} : vector<4x6xf32> to vector<4x1xf32>
    %278 = vector.extract_strided_slice %257 {offsets = [3, 0], sizes = [1, 128], strides = [1, 1]} : vector<4x128xf32> to vector<1x128xf32>
    %279 = vector.broadcast %277 : vector<4x1xf32> to vector<4x128xf32>
    %280 = vector.broadcast %278 : vector<1x128xf32> to vector<4x128xf32>
    %281 = arith.mulf %279, %280 : vector<4x128xf32>
    %282 = arith.addf %276, %281 : vector<4x128xf32>
    %283 = vector.extract_strided_slice %173 {offsets = [0, 4], sizes = [4, 1], strides = [1, 1]} : vector<4x6xf32> to vector<4x1xf32>
    %284 = vector.broadcast %283 : vector<4x1xf32> to vector<4x128xf32>
    %285 = arith.addf %282, %284 : vector<4x128xf32>
    %286 = vector.extract_strided_slice %173 {offsets = [0, 5], sizes = [4, 1], strides = [1, 1]} : vector<4x6xf32> to vector<4x1xf32>
    %287 = vector.shape_cast %4 : vector<1x128xi1> to vector<1x128xi1>
    %288 = vector.broadcast %287 : vector<1x128xi1> to vector<4x128xi1>
    %289 = vector.shape_cast %286 : vector<4x1xf32> to vector<4x1xf32>
    %290 = vector.broadcast %289 : vector<4x1xf32> to vector<4x128xf32>
    %291 = arith.select %288, %285, %290 : vector<4x128xi1>, vector<4x128xf32>
    %c0_47 = arith.constant 0 : index
    %c0_48 = arith.constant 0 : index
    %292 = vector.load %arg7[%c0_47, %c0_48] : memref<4x10xf32, #tpu.memory_space<vmem>>, vector<4x10xf32>
    %c0_49 = arith.constant 0 : index
    %c0_50 = arith.constant 0 : index
    %293 = vector.load %arg8[%c0_49, %c0_50] : memref<8x6xf32, #tpu.memory_space<vmem>>, vector<8x6xf32>
    %cst_51 = arith.constant 0.000000e+00 : f32
    %294 = vector.broadcast %cst_51 : f32 to vector<4x128xf32>
    %c4_i32_52 = arith.constant 4 : i32
    %295 = tpu.dynamic_rotate %291 by %c4_i32_52 dim 1 : vector<4x128xf32>, i32 -> vector<4x128xf32>
    %296 = vector.extract_strided_slice %292 {offsets = [0, 0], sizes = [4, 1], strides = [1, 1]} : vector<4x10xf32> to vector<4x1xf32>
    %297 = vector.broadcast %296 : vector<4x1xf32> to vector<4x128xf32>
    %298 = arith.mulf %295, %297 : vector<4x128xf32>
    %cst_53 = arith.constant 0.000000e+00 : f32
    %299 = vector.shape_cast %9 : vector<1x128xi1> to vector<1x128xi1>
    %300 = vector.broadcast %299 : vector<1x128xi1> to vector<4x128xi1>
    %301 = vector.broadcast %cst_53 : f32 to vector<4x128xf32>
    %302 = arith.select %300, %298, %301 : vector<4x128xi1>, vector<4x128xf32>
    %303 = arith.addf %294, %302 : vector<4x128xf32>
    %c3_i32_54 = arith.constant 3 : i32
    %304 = tpu.dynamic_rotate %291 by %c3_i32_54 dim 1 : vector<4x128xf32>, i32 -> vector<4x128xf32>
    %305 = vector.extract_strided_slice %292 {offsets = [0, 1], sizes = [4, 1], strides = [1, 1]} : vector<4x10xf32> to vector<4x1xf32>
    %306 = vector.broadcast %305 : vector<4x1xf32> to vector<4x128xf32>
    %307 = arith.mulf %304, %306 : vector<4x128xf32>
    %cst_55 = arith.constant 0.000000e+00 : f32
    %308 = vector.shape_cast %14 : vector<1x128xi1> to vector<1x128xi1>
    %309 = vector.broadcast %308 : vector<1x128xi1> to vector<4x128xi1>
    %310 = vector.broadcast %cst_55 : f32 to vector<4x128xf32>
    %311 = arith.select %309, %307, %310 : vector<4x128xi1>, vector<4x128xf32>
    %312 = arith.addf %303, %311 : vector<4x128xf32>
    %c2_i32_56 = arith.constant 2 : i32
    %313 = tpu.dynamic_rotate %291 by %c2_i32_56 dim 1 : vector<4x128xf32>, i32 -> vector<4x128xf32>
    %314 = vector.extract_strided_slice %292 {offsets = [0, 2], sizes = [4, 1], strides = [1, 1]} : vector<4x10xf32> to vector<4x1xf32>
    %315 = vector.broadcast %314 : vector<4x1xf32> to vector<4x128xf32>
    %316 = arith.mulf %313, %315 : vector<4x128xf32>
    %cst_57 = arith.constant 0.000000e+00 : f32
    %317 = vector.shape_cast %19 : vector<1x128xi1> to vector<1x128xi1>
    %318 = vector.broadcast %317 : vector<1x128xi1> to vector<4x128xi1>
    %319 = vector.broadcast %cst_57 : f32 to vector<4x128xf32>
    %320 = arith.select %318, %316, %319 : vector<4x128xi1>, vector<4x128xf32>
    %321 = arith.addf %312, %320 : vector<4x128xf32>
    %c1_i32_58 = arith.constant 1 : i32
    %322 = tpu.dynamic_rotate %291 by %c1_i32_58 dim 1 : vector<4x128xf32>, i32 -> vector<4x128xf32>
    %323 = vector.extract_strided_slice %292 {offsets = [0, 3], sizes = [4, 1], strides = [1, 1]} : vector<4x10xf32> to vector<4x1xf32>
    %324 = vector.broadcast %323 : vector<4x1xf32> to vector<4x128xf32>
    %325 = arith.mulf %322, %324 : vector<4x128xf32>
    %cst_59 = arith.constant 0.000000e+00 : f32
    %326 = vector.shape_cast %24 : vector<1x128xi1> to vector<1x128xi1>
    %327 = vector.broadcast %326 : vector<1x128xi1> to vector<4x128xi1>
    %328 = vector.broadcast %cst_59 : f32 to vector<4x128xf32>
    %329 = arith.select %327, %325, %328 : vector<4x128xi1>, vector<4x128xf32>
    %330 = arith.addf %321, %329 : vector<4x128xf32>
    %331 = vector.extract_strided_slice %292 {offsets = [0, 4], sizes = [4, 1], strides = [1, 1]} : vector<4x10xf32> to vector<4x1xf32>
    %332 = vector.broadcast %331 : vector<4x1xf32> to vector<4x128xf32>
    %333 = arith.mulf %291, %332 : vector<4x128xf32>
    %cst_60 = arith.constant 0.000000e+00 : f32
    %334 = vector.shape_cast %29 : vector<1x128xi1> to vector<1x128xi1>
    %335 = vector.broadcast %334 : vector<1x128xi1> to vector<4x128xi1>
    %336 = vector.broadcast %cst_60 : f32 to vector<4x128xf32>
    %337 = arith.select %335, %333, %336 : vector<4x128xi1>, vector<4x128xf32>
    %338 = arith.addf %330, %337 : vector<4x128xf32>
    %c127_i32_61 = arith.constant 127 : i32
    %339 = tpu.dynamic_rotate %291 by %c127_i32_61 dim 1 : vector<4x128xf32>, i32 -> vector<4x128xf32>
    %340 = vector.extract_strided_slice %292 {offsets = [0, 5], sizes = [4, 1], strides = [1, 1]} : vector<4x10xf32> to vector<4x1xf32>
    %341 = vector.broadcast %340 : vector<4x1xf32> to vector<4x128xf32>
    %342 = arith.mulf %339, %341 : vector<4x128xf32>
    %cst_62 = arith.constant 0.000000e+00 : f32
    %343 = vector.shape_cast %34 : vector<1x128xi1> to vector<1x128xi1>
    %344 = vector.broadcast %343 : vector<1x128xi1> to vector<4x128xi1>
    %345 = vector.broadcast %cst_62 : f32 to vector<4x128xf32>
    %346 = arith.select %344, %342, %345 : vector<4x128xi1>, vector<4x128xf32>
    %347 = arith.addf %338, %346 : vector<4x128xf32>
    %c126_i32_63 = arith.constant 126 : i32
    %348 = tpu.dynamic_rotate %291 by %c126_i32_63 dim 1 : vector<4x128xf32>, i32 -> vector<4x128xf32>
    %349 = vector.extract_strided_slice %292 {offsets = [0, 6], sizes = [4, 1], strides = [1, 1]} : vector<4x10xf32> to vector<4x1xf32>
    %350 = vector.broadcast %349 : vector<4x1xf32> to vector<4x128xf32>
    %351 = arith.mulf %348, %350 : vector<4x128xf32>
    %cst_64 = arith.constant 0.000000e+00 : f32
    %352 = vector.shape_cast %39 : vector<1x128xi1> to vector<1x128xi1>
    %353 = vector.broadcast %352 : vector<1x128xi1> to vector<4x128xi1>
    %354 = vector.broadcast %cst_64 : f32 to vector<4x128xf32>
    %355 = arith.select %353, %351, %354 : vector<4x128xi1>, vector<4x128xf32>
    %356 = arith.addf %347, %355 : vector<4x128xf32>
    %c125_i32_65 = arith.constant 125 : i32
    %357 = tpu.dynamic_rotate %291 by %c125_i32_65 dim 1 : vector<4x128xf32>, i32 -> vector<4x128xf32>
    %358 = vector.extract_strided_slice %292 {offsets = [0, 7], sizes = [4, 1], strides = [1, 1]} : vector<4x10xf32> to vector<4x1xf32>
    %359 = vector.broadcast %358 : vector<4x1xf32> to vector<4x128xf32>
    %360 = arith.mulf %357, %359 : vector<4x128xf32>
    %cst_66 = arith.constant 0.000000e+00 : f32
    %361 = vector.shape_cast %44 : vector<1x128xi1> to vector<1x128xi1>
    %362 = vector.broadcast %361 : vector<1x128xi1> to vector<4x128xi1>
    %363 = vector.broadcast %cst_66 : f32 to vector<4x128xf32>
    %364 = arith.select %362, %360, %363 : vector<4x128xi1>, vector<4x128xf32>
    %365 = arith.addf %356, %364 : vector<4x128xf32>
    %c124_i32_67 = arith.constant 124 : i32
    %366 = tpu.dynamic_rotate %291 by %c124_i32_67 dim 1 : vector<4x128xf32>, i32 -> vector<4x128xf32>
    %367 = vector.extract_strided_slice %292 {offsets = [0, 8], sizes = [4, 1], strides = [1, 1]} : vector<4x10xf32> to vector<4x1xf32>
    %368 = vector.broadcast %367 : vector<4x1xf32> to vector<4x128xf32>
    %369 = arith.mulf %366, %368 : vector<4x128xf32>
    %cst_68 = arith.constant 0.000000e+00 : f32
    %370 = vector.shape_cast %49 : vector<1x128xi1> to vector<1x128xi1>
    %371 = vector.broadcast %370 : vector<1x128xi1> to vector<4x128xi1>
    %372 = vector.broadcast %cst_68 : f32 to vector<4x128xf32>
    %373 = arith.select %371, %369, %372 : vector<4x128xi1>, vector<4x128xf32>
    %374 = arith.addf %365, %373 : vector<4x128xf32>
    %375 = vector.extract_strided_slice %292 {offsets = [0, 9], sizes = [4, 1], strides = [1, 1]} : vector<4x10xf32> to vector<4x1xf32>
    %376 = vector.broadcast %375 : vector<4x1xf32> to vector<4x128xf32>
    %377 = arith.addf %374, %376 : vector<4x128xf32>
    %cst_69 = arith.constant 0.000000e+00 : f32
    %378 = vector.broadcast %cst_69 : f32 to vector<8x128xf32>
    %379 = vector.extract_strided_slice %293 {offsets = [0, 0], sizes = [8, 1], strides = [1, 1]} : vector<8x6xf32> to vector<8x1xf32>
    %380 = vector.extract_strided_slice %377 {offsets = [0, 0], sizes = [1, 128], strides = [1, 1]} : vector<4x128xf32> to vector<1x128xf32>
    %381 = vector.broadcast %379 : vector<8x1xf32> to vector<8x128xf32>
    %382 = vector.broadcast %380 : vector<1x128xf32> to vector<8x128xf32>
    %383 = arith.mulf %381, %382 : vector<8x128xf32>
    %384 = arith.addf %378, %383 : vector<8x128xf32>
    %385 = vector.extract_strided_slice %293 {offsets = [0, 1], sizes = [8, 1], strides = [1, 1]} : vector<8x6xf32> to vector<8x1xf32>
    %386 = vector.extract_strided_slice %377 {offsets = [1, 0], sizes = [1, 128], strides = [1, 1]} : vector<4x128xf32> to vector<1x128xf32>
    %387 = vector.broadcast %385 : vector<8x1xf32> to vector<8x128xf32>
    %388 = vector.broadcast %386 : vector<1x128xf32> to vector<8x128xf32>
    %389 = arith.mulf %387, %388 : vector<8x128xf32>
    %390 = arith.addf %384, %389 : vector<8x128xf32>
    %391 = vector.extract_strided_slice %293 {offsets = [0, 2], sizes = [8, 1], strides = [1, 1]} : vector<8x6xf32> to vector<8x1xf32>
    %392 = vector.extract_strided_slice %377 {offsets = [2, 0], sizes = [1, 128], strides = [1, 1]} : vector<4x128xf32> to vector<1x128xf32>
    %393 = vector.broadcast %391 : vector<8x1xf32> to vector<8x128xf32>
    %394 = vector.broadcast %392 : vector<1x128xf32> to vector<8x128xf32>
    %395 = arith.mulf %393, %394 : vector<8x128xf32>
    %396 = arith.addf %390, %395 : vector<8x128xf32>
    %397 = vector.extract_strided_slice %293 {offsets = [0, 3], sizes = [8, 1], strides = [1, 1]} : vector<8x6xf32> to vector<8x1xf32>
    %398 = vector.extract_strided_slice %377 {offsets = [3, 0], sizes = [1, 128], strides = [1, 1]} : vector<4x128xf32> to vector<1x128xf32>
    %399 = vector.broadcast %397 : vector<8x1xf32> to vector<8x128xf32>
    %400 = vector.broadcast %398 : vector<1x128xf32> to vector<8x128xf32>
    %401 = arith.mulf %399, %400 : vector<8x128xf32>
    %402 = arith.addf %396, %401 : vector<8x128xf32>
    %403 = vector.extract_strided_slice %293 {offsets = [0, 4], sizes = [8, 1], strides = [1, 1]} : vector<8x6xf32> to vector<8x1xf32>
    %404 = vector.broadcast %403 : vector<8x1xf32> to vector<8x128xf32>
    %405 = arith.addf %402, %404 : vector<8x128xf32>
    %406 = vector.extract_strided_slice %293 {offsets = [0, 5], sizes = [8, 1], strides = [1, 1]} : vector<8x6xf32> to vector<8x1xf32>
    %407 = vector.shape_cast %4 : vector<1x128xi1> to vector<1x128xi1>
    %408 = vector.broadcast %407 : vector<1x128xi1> to vector<8x128xi1>
    %409 = vector.shape_cast %406 : vector<8x1xf32> to vector<8x1xf32>
    %410 = vector.broadcast %409 : vector<8x1xf32> to vector<8x128xf32>
    %411 = arith.select %408, %405, %410 : vector<8x128xi1>, vector<8x128xf32>
    %c0_70 = arith.constant 0 : index
    %c0_71 = arith.constant 0 : index
    %412 = vector.load %arg9[%c0_70, %c0_71] : memref<8x5xf32, #tpu.memory_space<vmem>>, vector<8x5xf32>
    %cst_72 = arith.constant 0.000000e+00 : f32
    %413 = vector.broadcast %cst_72 : f32 to vector<8x128xf32>
    %414 = vector.extract_strided_slice %412 {offsets = [0, 0], sizes = [8, 1], strides = [1, 1]} : vector<8x5xf32> to vector<8x1xf32>
    %415 = vector.extract_strided_slice %51 {offsets = [0, 0], sizes = [1, 128], strides = [1, 1]} : vector<4x128xf32> to vector<1x128xf32>
    %416 = vector.broadcast %414 : vector<8x1xf32> to vector<8x128xf32>
    %417 = vector.broadcast %415 : vector<1x128xf32> to vector<8x128xf32>
    %418 = arith.mulf %416, %417 : vector<8x128xf32>
    %419 = arith.addf %413, %418 : vector<8x128xf32>
    %420 = vector.extract_strided_slice %412 {offsets = [0, 1], sizes = [8, 1], strides = [1, 1]} : vector<8x5xf32> to vector<8x1xf32>
    %421 = vector.extract_strided_slice %51 {offsets = [1, 0], sizes = [1, 128], strides = [1, 1]} : vector<4x128xf32> to vector<1x128xf32>
    %422 = vector.broadcast %420 : vector<8x1xf32> to vector<8x128xf32>
    %423 = vector.broadcast %421 : vector<1x128xf32> to vector<8x128xf32>
    %424 = arith.mulf %422, %423 : vector<8x128xf32>
    %425 = arith.addf %419, %424 : vector<8x128xf32>
    %426 = vector.extract_strided_slice %412 {offsets = [0, 2], sizes = [8, 1], strides = [1, 1]} : vector<8x5xf32> to vector<8x1xf32>
    %427 = vector.extract_strided_slice %51 {offsets = [2, 0], sizes = [1, 128], strides = [1, 1]} : vector<4x128xf32> to vector<1x128xf32>
    %428 = vector.broadcast %426 : vector<8x1xf32> to vector<8x128xf32>
    %429 = vector.broadcast %427 : vector<1x128xf32> to vector<8x128xf32>
    %430 = arith.mulf %428, %429 : vector<8x128xf32>
    %431 = arith.addf %425, %430 : vector<8x128xf32>
    %432 = vector.extract_strided_slice %412 {offsets = [0, 3], sizes = [8, 1], strides = [1, 1]} : vector<8x5xf32> to vector<8x1xf32>
    %433 = vector.extract_strided_slice %51 {offsets = [3, 0], sizes = [1, 128], strides = [1, 1]} : vector<4x128xf32> to vector<1x128xf32>
    %434 = vector.broadcast %432 : vector<8x1xf32> to vector<8x128xf32>
    %435 = vector.broadcast %433 : vector<1x128xf32> to vector<8x128xf32>
    %436 = arith.mulf %434, %435 : vector<8x128xf32>
    %437 = arith.addf %431, %436 : vector<8x128xf32>
    %438 = vector.extract_strided_slice %412 {offsets = [0, 4], sizes = [8, 1], strides = [1, 1]} : vector<8x5xf32> to vector<8x1xf32>
    %439 = vector.broadcast %438 : vector<8x1xf32> to vector<8x128xf32>
    %440 = arith.addf %437, %439 : vector<8x128xf32>
    %441 = arith.addf %411, %440 : vector<8x128xf32>
    %cst_73 = arith.constant 0.000000e+00 : f32
    %442 = vector.broadcast %cst_73 : f32 to vector<8x128xf32>
    %443 = arith.maximumf %441, %442 : vector<8x128xf32>
    %c0_74 = arith.constant 0 : index
    %c0_75 = arith.constant 0 : index
    %c0_76 = arith.constant 0 : index
    %444 = vector.load %arg10[%c0_74, %c0_75, %c0_76] : memref<1x8x128xf32, #tpu.memory_space<vmem>>, vector<1x8x128xf32>
    %445 = vector.shape_cast %444 : vector<1x8x128xf32> to vector<8x128xf32>
    %446 = vector.shape_cast %443 : vector<8x128xf32> to vector<1x8x128xf32>
    tpu.vector_store %arg10[%c0_74, %c0_75, %c0_76], %446 {strides = array<i32>} : memref<1x8x128xf32, #tpu.memory_space<vmem>>, vector<1x8x128xf32>,
    return
  }
  func.func @transform_0(%arg0: i32, %arg1: memref<2xi32, #tpu.memory_space<smem>>) -> (i32, i32, i32) {
    %c0_i32 = arith.constant 0 : i32
    %c0_i32_0 = arith.constant 0 : i32
    %c0_i32_1 = arith.constant 0 : i32
    return %arg0, %c0_i32, %c0_i32_0 : i32, i32, i32
  }
  func.func @transform_1(%arg0: i32, %arg1: memref<2xi32, #tpu.memory_space<smem>>) -> (i32, i32) {
    %c0_i32 = arith.constant 0 : i32
    %c0_i32_0 = arith.constant 0 : i32
    %c0_i32_1 = arith.constant 0 : i32
    return %c0_i32, %c0_i32_0 : i32, i32
  }
  func.func @transform_2(%arg0: i32, %arg1: memref<2xi32, #tpu.memory_space<smem>>) -> (i32, i32) {
    %c0_i32 = arith.constant 0 : i32
    %c0_i32_0 = arith.constant 0 : i32
    %c0_i32_1 = arith.constant 0 : i32
    return %c0_i32, %c0_i32_0 : i32, i32
  }
  func.func @transform_3(%arg0: i32, %arg1: memref<2xi32, #tpu.memory_space<smem>>) -> (i32, i32) {
    %c0_i32 = arith.constant 0 : i32
    %c0_i32_0 = arith.constant 0 : i32
    %c0_i32_1 = arith.constant 0 : i32
    return %c0_i32, %c0_i32_0 : i32, i32
  }
  func.func @transform_4(%arg0: i32, %arg1: memref<2xi32, #tpu.memory_space<smem>>) -> (i32, i32) {
    %c0_i32 = arith.constant 0 : i32
    %c0_i32_0 = arith.constant 0 : i32
    %c0_i32_1 = arith.constant 0 : i32
    return %c0_i32, %c0_i32_0 : i32, i32
  }
  func.func @transform_5(%arg0: i32, %arg1: memref<2xi32, #tpu.memory_space<smem>>) -> (i32, i32) {
    %c0_i32 = arith.constant 0 : i32
    %c0_i32_0 = arith.constant 0 : i32
    %c0_i32_1 = arith.constant 0 : i32
    return %c0_i32, %c0_i32_0 : i32, i32
  }
  func.func @transform_6(%arg0: i32, %arg1: memref<2xi32, #tpu.memory_space<smem>>) -> (i32, i32) {
    %c0_i32 = arith.constant 0 : i32
    %c0_i32_0 = arith.constant 0 : i32
    %c0_i32_1 = arith.constant 0 : i32
    return %c0_i32, %c0_i32_0 : i32, i32
  }
  func.func @transform_7(%arg0: i32, %arg1: memref<2xi32, #tpu.memory_space<smem>>) -> (i32, i32) {
    %c0_i32 = arith.constant 0 : i32
    %c0_i32_0 = arith.constant 0 : i32
    %c0_i32_1 = arith.constant 0 : i32
    return %c0_i32, %c0_i32_0 : i32, i32
  }
  func.func @transform_8(%arg0: i32, %arg1: memref<2xi32, #tpu.memory_space<smem>>) -> (i32, i32, i32) {
    %c0_i32 = arith.constant 0 : i32
    %c0_i32_0 = arith.constant 0 : i32
    %c0_i32_1 = arith.constant 0 : i32
    return %arg0, %c0_i32, %c0_i32_0 : i32, i32, i32
  }
}

</mosaic_0001>

<llo_original>
// kernel: tpu_custom_call.1
$region0: #{tpu_custom_call.1}
  #allocation0 [shape = 'u32[]', space=smem, size = 0x4, offset = 0x4, fixed_abs, tag = 'smem constant byte address 0x4 - core index']
  #allocation1 [shape = 'u32[144,128]{1,0:T(1,128)}', space=vmem, size = 0x12000, scoped, tag = 'internal scratch']
  #allocation2 [shape = 's32[1]{0}', space=sflag, size = 0x4, scoped, tag = 'scoped memory for tpu_custom_call.1']
  #allocation3 [shape = 'u8[512]{0}', space=smem, size = 0x200, scoped, tag = 'prefetched SMEM operand 0']
  %s0 = inlined_call_operand.hbm [shape: s32[2], index: 0, kind: input, shape index: {}]
  %s1 = inlined_call_operand.hbm [shape: f32[2,4,128], index: 1, kind: input, shape index: {}]
  %s2 = inlined_call_operand.hbm [shape: f32[4,10], index: 2, kind: input, shape index: {}]
  %s3 = inlined_call_operand.hbm [shape: f32[4,6], index: 3, kind: input, shape index: {}]
  %s4 = inlined_call_operand.hbm [shape: f32[4,10], index: 4, kind: input, shape index: {}]
  %s5 = inlined_call_operand.hbm [shape: f32[4,6], index: 5, kind: input, shape index: {}]
  %s6 = inlined_call_operand.vmem [shape: f32[4,10], index: 6, kind: input, shape index: {}]
  %s7 = inlined_call_operand.vmem [shape: f32[8,6], index: 7, kind: input, shape index: {}]
  %s8 = inlined_call_operand.vmem [shape: f32[8,5], index: 8, kind: input, shape index: {}]
  %s9 = inlined_call_operand.hbm [shape: f32[2,8,128], index: 9, kind: output, shape index: {}]
  %s10 = sld [smem:[#allocation0]]
  $region85: #{tpu_custom_call.1} parent=0
    _
  %s12 = ssub.s32 1, %s10
  %s13 = scalar_select 0, %s12, %s10
  %15 = dma.hbm_to_smem %s0, 16, [#allocation3], [#allocation2]
  %16 = dma.done [#allocation2], 16
  %17 = sfence
  $region1: #{tpu_custom_call.1} parent=0
    #allocation4 [shape = 'u8[4096]{0}', space=vmem, size = 0x1000, scoped, tag = 'input window, operand 1']
    #allocation5 [shape = 's32[2]{0}', space=sflag, size = 0x8, scoped, tag = 'scoped memory for tpu_custom_call.1']
    #allocation6 [shape = 's32[2]{0}', space=sflag, size = 0x8, scoped, tag = 'scoped memory for tpu_custom_call.1']
    #allocation7 [shape = 'u8[2048]{0}', space=vmem, size = 0x800, scoped, tag = 'input window, operand 2, single buffered']
    #allocation8 [shape = 's32[1]{0}', space=sflag, size = 0x4, scoped, tag = 'scoped memory for tpu_custom_call.1']
    #allocation9 [shape = 'u8[2048]{0}', space=vmem, size = 0x800, scoped, tag = 'input window, operand 3, single buffered']
    #allocation10 [shape = 'u8[2048]{0}', space=vmem, size = 0x800, scoped, tag = 'input window, operand 4, single buffered']
    #allocation11 [shape = 's32[1]{0}', space=sflag, size = 0x4, scoped, tag = 'scoped memory for tpu_custom_call.1']
    #allocation12 [shape = 'u8[2048]{0}', space=vmem, size = 0x800, scoped, tag = 'input window, operand 5, single buffered']
    #allocation13 [shape = 'u8[8192]{0}', space=vmem, size = 0x2000, scoped, tag = 'output window, operand 0']
    %18 = vsyncpa [#allocation5], 0
    %s19 = scalar_lea.sflag [#allocation5], 1
    %20 = vsyncpa %s19, 0
    %21 = vsyncpa [#allocation8], 0
    %22 = vsyncpa [#allocation11], 0
    %23 = vsyncpa [#allocation6], 0
    %s24 = scalar_lea.sflag [#allocation6], 1
    %25 = vsyncpa %s24, 0
    loop: start=0, step=1, limit=4
    $region2: #{tpu_custom_call.1} parent=1 // loop_pre_header
      _
    $region3: #{tpu_custom_call.1} parent=1 // loop_header
      %s27 = sphi 0, %s31
      %p28 = scmp.ge.s32.totalorder %s27, 4
      %s37 = sphi 0, %s39
      %s40 = sphi 0, %s37
      %s41 = sphi 0, %s40
      %s57 = sphi 0, %s41
      %s61 = sphi 0, %s61
      %s63 = sphi 0, %s61
      %s64 = sphi 0, %s63
      %s78 = sphi 0, %s64
      %s82 = sphi 0, %s82
      %s84 = sphi 0, %s82
      %s85 = sphi 0, %s84
      %s99 = sphi 0, %s85
      %s103 = sphi 0, %s103
      %s105 = sphi 0, %s103
      %s106 = sphi 0, %s105
      %s120 = sphi 0, %s106
      %s124 = sphi 0, %s124
      %s126 = sphi 0, %s124
      %s127 = sphi 0, %s126
      %s141 = sphi 0, %s127
      %s145 = sphi 0, %s145
      %s147 = sphi 0, %s145
      %s148 = sphi 0, %s147
      %s162 = sphi 0, %s148
      %s166 = sphi 0, %s166
      %s168 = sphi 0, %s166
      %s169 = sphi 0, %s168
      %s183 = sphi 0, %s169
      %s187 = sphi 0, %s187
      %s189 = sphi 0, %s187
      %s190 = sphi 0, %s189
      %s204 = sphi 0, %s190
      %s210 = sphi 0, %s212
      %s213 = sphi 0, %s210
      %s214 = sphi 0, %s213
      %s230 = sphi 0, %s214
    $region4: #{tpu_custom_call.1} parent=1 // loop_header_branch
      %30 = sbr.rel (%p28) target = $region8
    $region5: #{tpu_custom_call.1} parent=1 // loop_body
      %s32 = ssub.s32 %s27, 1
      %s33 = ssub.s32 %s27, 2
      %s34 = sadd.s32 %s27, 1
      %s35 = ssub.s32 %s27, %s34
      %p36 = scmp.eq.s32.totalorder %s35, 0
      %s38 = sadd.s32 %s37, 1
      %s39 = scalar_select %p36, %s37, %s38
      %p42 = pneg %p36
      %p43 = scmp.eq.s32.totalorder %s27, 1
      %p44 = por %p42, %p43
      %p45 = scmp.ne.s32.totalorder %s37, %s40
      %p46 = scmp.eq.s32.totalorder %s27, 0
      %p47 = por %p45, %p46
      %p48 = scmp.ne.s32.totalorder %s37, %s40
      %p49 = scmp.eq.s32.totalorder %s32, 1
      %p50 = por %p48, %p49
      %p51 = scmp.ne.s32.totalorder %s40, %s41
      %p52 = scmp.eq.s32.totalorder %s32, 0
      %p53 = por %p51, %p52
      %p54 = scmp.ne.s32.totalorder %s40, %s41
      %p55 = scmp.eq.s32.totalorder %s33, 1
      %p56 = por %p54, %p55
      %p58 = scmp.ne.s32.totalorder %s41, %s57
      %p59 = scmp.eq.s32.totalorder %s33, 0
      %p60 = por %p58, %p59
      %s62 = sadd.s32 %s61, 1
      %p65 = scmp.eq.s32.totalorder %s27, 1
      %p66 = scmp.ne.s32.totalorder %s61, %s63
      %p67 = scmp.eq.s32.totalorder %s27, 0
      %p68 = por %p66, %p67
      %p69 = scmp.ne.s32.totalorder %s61, %s63
      %p70 = scmp.eq.s32.totalorder %s32, 1
      %p71 = por %p69, %p70
      %p72 = scmp.ne.s32.totalorder %s63, %s64
      %p73 = scmp.eq.s32.totalorder %s32, 0
      %p74 = por %p72, %p73
      %p75 = scmp.ne.s32.totalorder %s63, %s64
      %p76 = scmp.eq.s32.totalorder %s33, 1
      %p77 = por %p75, %p76
      %p79 = scmp.ne.s32.totalorder %s64, %s78
      %p80 = scmp.eq.s32.totalorder %s33, 0
      %p81 = por %p79, %p80
      %s83 = sadd.s32 %s82, 1
      %p86 = scmp.eq.s32.totalorder %s27, 1
      %p87 = scmp.ne.s32.totalorder %s82, %s84
      %p88 = scmp.eq.s32.totalorder %s27, 0
      %p89 = por %p87, %p88
      %p90 = scmp.ne.s32.totalorder %s82, %s84
      %p91 = scmp.eq.s32.totalorder %s32, 1
      %p92 = por %p90, %p91
      %p93 = scmp.ne.s32.totalorder %s84, %s85
      %p94 = scmp.eq.s32.totalorder %s32, 0
      %p95 = por %p93, %p94
      %p96 = scmp.ne.s32.totalorder %s84, %s85
      %p97 = scmp.eq.s32.totalorder %s33, 1
      %p98 = por %p96, %p97
      %p100 = scmp.ne.s32.totalorder %s85, %s99
      %p101 = scmp.eq.s32.totalorder %s33, 0
      %p102 = por %p100, %p101
      %s104 = sadd.s32 %s103, 1
      %p107 = scmp.eq.s32.totalorder %s27, 1
      %p108 = scmp.ne.s32.totalorder %s103, %s105
      %p109 = scmp.eq.s32.totalorder %s27, 0
      %p110 = por %p108, %p109
      %p111 = scmp.ne.s32.totalorder %s103, %s105
      %p112 = scmp.eq.s32.totalorder %s32, 1
      %p113 = por %p111, %p112
      %p114 = scmp.ne.s32.totalorder %s105, %s106
      %p115 = scmp.eq.s32.totalorder %s32, 0
      %p116 = por %p114, %p115
      %p117 = scmp.ne.s32.totalorder %s105, %s106
      %p118 = scmp.eq.s32.totalorder %s33, 1
      %p119 = por %p117, %p118
      %p121 = scmp.ne.s32.totalorder %s106, %s120
      %p122 = scmp.eq.s32.totalorder %s33, 0
      %p123 = por %p121, %p122
      %s125 = sadd.s32 %s124, 1
      %p128 = scmp.eq.s32.totalorder %s27, 1
      %p129 = scmp.ne.s32.totalorder %s124, %s126
      %p130 = scmp.eq.s32.totalorder %s27, 0
      %p131 = por %p129, %p130
      %p132 = scmp.ne.s32.totalorder %s124, %s126
      %p133 = scmp.eq.s32.totalorder %s32, 1
      %p134 = por %p132, %p133
      %p135 = scmp.ne.s32.totalorder %s126, %s127
      %p136 = scmp.eq.s32.totalorder %s32, 0
      %p137 = por %p135, %p136
      %p138 = scmp.ne.s32.totalorder %s126, %s127
      %p139 = scmp.eq.s32.totalorder %s33, 1
      %p140 = por %p138, %p139
      %p142 = scmp.ne.s32.totalorder %s127, %s141
      %p143 = scmp.eq.s32.totalorder %s33, 0
      %p144 = por %p142, %p143
      %s146 = sadd.s32 %s145, 1
      %p149 = scmp.eq.s32.totalorder %s27, 1
      %p150 = scmp.ne.s32.totalorder %s145, %s147
      %p151 = scmp.eq.s32.totalorder %s27, 0
      %p152 = por %p150, %p151
      %p153 = scmp.ne.s32.totalorder %s145, %s147
      %p154 = scmp.eq.s32.totalorder %s32, 1
      %p155 = por %p153, %p154
      %p156 = scmp.ne.s32.totalorder %s147, %s148
      %p157 = scmp.eq.s32.totalorder %s32, 0
      %p158 = por %p156, %p157
      %p159 = scmp.ne.s32.totalorder %s147, %s148
      %p160 = scmp.eq.s32.totalorder %s33, 1
      %p161 = por %p159, %p160
      %p163 = scmp.ne.s32.totalorder %s148, %s162
      %p164 = scmp.eq.s32.totalorder %s33, 0
      %p165 = por %p163, %p164
      %s167 = sadd.s32 %s166, 1
      %p170 = scmp.eq.s32.totalorder %s27, 1
      %p171 = scmp.ne.s32.totalorder %s166, %s168
      %p172 = scmp.eq.s32.totalorder %s27, 0
      %p173 = por %p171, %p172
      %p174 = scmp.ne.s32.totalorder %s166, %s168
      %p175 = scmp.eq.s32.totalorder %s32, 1
      %p176 = por %p174, %p175
      %p177 = scmp.ne.s32.totalorder %s168, %s169
      %p178 = scmp.eq.s32.totalorder %s32, 0
      %p179 = por %p177, %p178
      %p180 = scmp.ne.s32.totalorder %s168, %s169
      %p181 = scmp.eq.s32.totalorder %s33, 1
      %p182 = por %p180, %p181
      %p184 = scmp.ne.s32.totalorder %s169, %s183
      %p185 = scmp.eq.s32.totalorder %s33, 0
      %p186 = por %p184, %p185
      %s188 = sadd.s32 %s187, 1
      %p191 = scmp.eq.s32.totalorder %s27, 1
      %p192 = scmp.ne.s32.totalorder %s187, %s189
      %p193 = scmp.eq.s32.totalorder %s27, 0
      %p194 = por %p192, %p193
      %p195 = scmp.ne.s32.totalorder %s187, %s189
      %p196 = scmp.eq.s32.totalorder %s32, 1
      %p197 = por %p195, %p196
      %p198 = scmp.ne.s32.totalorder %s189, %s190
      %p199 = scmp.eq.s32.totalorder %s32, 0
      %p200 = por %p198, %p199
      %p201 = scmp.ne.s32.totalorder %s189, %s190
      %p202 = scmp.eq.s32.totalorder %s33, 1
      %p203 = por %p201, %p202
      %p205 = scmp.ne.s32.totalorder %s190, %s204
      %p206 = scmp.eq.s32.totalorder %s33, 0
      %p207 = por %p205, %p206
      %s208 = ssub.s32 %s27, %s34
      %p209 = scmp.eq.s32.totalorder %s208, 0
      %s211 = sadd.s32 %s210, 1
      %s212 = scalar_select %p209, %s210, %s211
      %p215 = pneg %p209
      %p216 = scmp.eq.s32.totalorder %s27, 1
      %p217 = por %p215, %p216
      %p218 = scmp.ne.s32.totalorder %s210, %s213
      %p219 = scmp.eq.s32.totalorder %s27, 0
      %p220 = por %p218, %p219
      %p221 = scmp.ne.s32.totalorder %s210, %s213
      %p222 = scmp.eq.s32.totalorder %s32, 1
      %p223 = por %p221, %p222
      %p224 = scmp.ne.s32.totalorder %s213, %s214
      %p225 = scmp.eq.s32.totalorder %s32, 0
      %p226 = por %p224, %p225
      %p227 = scmp.ne.s32.totalorder %s213, %s214
      %p228 = scmp.eq.s32.totalorder %s33, 1
      %p229 = por %p227, %p228
      %p231 = scmp.ne.s32.totalorder %s214, %s230
      %p232 = scmp.eq.s32.totalorder %s33, 0
      %p233 = por %p231, %p232
      %p234 = scmp.le.s32.totalorder 1, %s27
      %p235 = scmp.lt.s32.totalorder %s27, 3
      %p236 = pnand %p234, %p235
      %p237 = pneg %p236
      // Predicated region
      $region9: #{tpu_custom_call.1} parent=5 // pred_check
        _
      $region10: #{tpu_custom_call.1} parent=5 // pred_check_branch
        %239 = sbr.rel (%p236) target = $region12
      $region11: #{tpu_custom_call.1} parent=5 // pred_region
        %s240 = ssub.s32 %s27, 1
        // Predicated region
        $region13: #{tpu_custom_call.1} parent=11 // pred_check
          %p241 = pneg %p74
        $region14: #{tpu_custom_call.1} parent=11 // pred_check_branch
          %243 = sbr.rel (%p241) target = $region16
        $region15: #{tpu_custom_call.1} parent=11 // pred_region
          %s245 = ssub.s32 64, 64
          %246 = vsyncadd [#allocation8], %s245
          %s248 = sshll.u32 [#allocation7], 4
          %s249 = int_to_ptr.vmem [resolvable:$true] %s248
          %251 = dma.hbm_to_vmem [thread:$0]  %s2, 64, %s249, [#allocation8]
        $region16: #{tpu_custom_call.1} parent=11 // pred_fallthru
          _
        // Predicated region
        $region17: #{tpu_custom_call.1} parent=11 // pred_check
          %p252 = pneg %p95
        $region18: #{tpu_custom_call.1} parent=11 // pred_check_branch
          %254 = sbr.rel (%p252) target = $region20
        $region19: #{tpu_custom_call.1} parent=11 // pred_region
          %s256 = ssub.s32 64, 64
          %257 = vsyncadd [#allocation8], %s256
          %s259 = sshll.u32 [#allocation9], 4
          %s260 = int_to_ptr.vmem [resolvable:$true] %s259
          %262 = dma.hbm_to_vmem [thread:$0]  %s3, 64, %s260, [#allocation8]
        $region20: #{tpu_custom_call.1} parent=11 // pred_fallthru
          _
        // Predicated region
        $region21: #{tpu_custom_call.1} parent=11 // pred_check
          %p263 = pneg %p116
        $region22: #{tpu_custom_call.1} parent=11 // pred_check_branch
          %265 = sbr.rel (%p263) target = $region24
        $region23: #{tpu_custom_call.1} parent=11 // pred_region
          %s267 = ssub.s32 64, 64
          %268 = vsyncadd [#allocation11], %s267
          %s270 = sshll.u32 [#allocation10], 4
          %s271 = int_to_ptr.vmem [resolvable:$true] %s270
          %273 = dma.hbm_to_vmem [thread:$0]  %s4, 64, %s271, [#allocation11]
        $region24: #{tpu_custom_call.1} parent=11 // pred_fallthru
          _
        // Predicated region
        $region25: #{tpu_custom_call.1} parent=11 // pred_check
          %p274 = pneg %p137
        $region26: #{tpu_custom_call.1} parent=11 // pred_check_branch
          %276 = sbr.rel (%p274) target = $region28
        $region27: #{tpu_custom_call.1} parent=11 // pred_region
          %s278 = ssub.s32 64, 64
          %279 = vsyncadd [#allocation11], %s278
          %s281 = sshll.u32 [#allocation12], 4
          %s282 = int_to_ptr.vmem [resolvable:$true] %s281
          %284 = dma.hbm_to_vmem [thread:$0]  %s5, 64, %s282, [#allocation11]
        $region28: #{tpu_custom_call.1} parent=11 // pred_fallthru
          _
        // Predicated region
        $region29: #{tpu_custom_call.1} parent=11 // pred_check
          %p285 = pneg %p158
        $region30: #{tpu_custom_call.1} parent=11 // pred_check_branch
          %287 = sbr.rel (%p285) target = $region32
        $region31: #{tpu_custom_call.1} parent=11 // pred_region
          _
        $region32: #{tpu_custom_call.1} parent=11 // pred_fallthru
          _
        // Predicated region
        $region33: #{tpu_custom_call.1} parent=11 // pred_check
          %p288 = pneg %p179
        $region34: #{tpu_custom_call.1} parent=11 // pred_check_branch
          %290 = sbr.rel (%p288) target = $region36
        $region35: #{tpu_custom_call.1} parent=11 // pred_region
          _
        $region36: #{tpu_custom_call.1} parent=11 // pred_fallthru
          _
        // Predicated region
        $region37: #{tpu_custom_call.1} parent=11 // pred_check
          %p291 = pneg %p200
        $region38: #{tpu_custom_call.1} parent=11 // pred_check_branch
          %293 = sbr.rel (%p291) target = $region40
        $region39: #{tpu_custom_call.1} parent=11 // pred_region
          _
        $region40: #{tpu_custom_call.1} parent=11 // pred_fallthru
          _
      $region12: #{tpu_custom_call.1} parent=5 // pred_fallthru
        _
      %p294 = scmp.lt.s32.totalorder %s27, 2
      // Predicated region
      $region41: #{tpu_custom_call.1} parent=5 // pred_check
        %p295 = pneg %p294
      $region42: #{tpu_custom_call.1} parent=5 // pred_check_branch
        %297 = sbr.rel (%p295) target = $region44
      $region43: #{tpu_custom_call.1} parent=5 // pred_region
        // Predicated region
        $region45: #{tpu_custom_call.1} parent=43 // pred_check
          %p298 = pneg %p47
        $region46: #{tpu_custom_call.1} parent=43 // pred_check_branch
          %300 = sbr.rel (%p298) target = $region48
        $region47: #{tpu_custom_call.1} parent=43 // pred_region
          %s301 = sand.u32 %s37, 1
          %s302 = scalar_lea.sflag [#allocation5], %s301
          %s303 = sand.u32 %s37, 1
          %s304 = smul.addr %s303, 4
          %s305 = scalar_lea.vmem [#allocation4], %s304
          %s307 = ssub.s32 64, 64
          %308 = vsyncadd %s302, %s307
          %s309 = smul.addr %s27, 64
          %s310 = scalar_lea.hbm %s1, %s309
          %s312 = sshll.u32 %s305, 4
          %s313 = int_to_ptr.vmem [resolvable:$true] %s312
          %315 = dma.hbm_to_vmem [thread:$0]  %s310, 64, %s313, %s302
        $region48: #{tpu_custom_call.1} parent=43 // pred_fallthru
          _
      $region44: #{tpu_custom_call.1} parent=5 // pred_fallthru
        _
      %p316 = scmp.le.s32.totalorder 1, %s27
      %p317 = scmp.lt.s32.totalorder %s27, 3
      %p318 = pnand %p316, %p317
      %p319 = pneg %p318
      // Predicated region
      $region49: #{tpu_custom_call.1} parent=5 // pred_check
        _
      $region50: #{tpu_custom_call.1} parent=5 // pred_check_branch
        %321 = sbr.rel (%p318) target = $region52
      $region51: #{tpu_custom_call.1} parent=5 // pred_region
        %s322 = ssub.s32 %s27, 1
        %s323 = sand.u32 %s40, 1
        %s324 = scalar_lea.sflag [#allocation5], %s323
        %s325 = sand.u32 %s40, 1
        %s326 = smul.addr %s325, 4
        %s327 = scalar_lea.vmem [#allocation4], %s326
        // Predicated region
        $region53: #{tpu_custom_call.1} parent=51 // pred_check
          %p328 = pneg %p53
        $region54: #{tpu_custom_call.1} parent=51 // pred_check_branch
          %330 = sbr.rel (%p328) target = $region56
        $region55: #{tpu_custom_call.1} parent=51 // pred_region
          %331 = dma.done %s324, 64
        $region56: #{tpu_custom_call.1} parent=51 // pred_fallthru
          _
        // Predicated region
        $region57: #{tpu_custom_call.1} parent=51 // pred_check
          %p332 = pneg %p74
        $region58: #{tpu_custom_call.1} parent=51 // pred_check_branch
          %334 = sbr.rel (%p332) target = $region60
        $region59: #{tpu_custom_call.1} parent=51 // pred_region
          %335 = dma.done [#allocation8], 64
        $region60: #{tpu_custom_call.1} parent=51 // pred_fallthru
          _
        // Predicated region
        $region61: #{tpu_custom_call.1} parent=51 // pred_check
          %p336 = pneg %p95
        $region62: #{tpu_custom_call.1} parent=51 // pred_check_branch
          %338 = sbr.rel (%p336) target = $region64
        $region63: #{tpu_custom_call.1} parent=51 // pred_region
          %339 = dma.done [#allocation8], 64
        $region64: #{tpu_custom_call.1} parent=51 // pred_fallthru
          _
        // Predicated region
        $region65: #{tpu_custom_call.1} parent=51 // pred_check
          %p340 = pneg %p116
        $region66: #{tpu_custom_call.1} parent=51 // pred_check_branch
          %342 = sbr.rel (%p340) target = $region68
        $region67: #{tpu_custom_call.1} parent=51 // pred_region
          %343 = dma.done [#allocation11], 64
        $region68: #{tpu_custom_call.1} parent=51 // pred_fallthru
          _
        // Predicated region
        $region69: #{tpu_custom_call.1} parent=51 // pred_check
          %p344 = pneg %p137
        $region70: #{tpu_custom_call.1} parent=51 // pred_check_branch
          %346 = sbr.rel (%p344) target = $region72
        $region71: #{tpu_custom_call.1} parent=51 // pred_region
          %347 = dma.done [#allocation11], 64
        $region72: #{tpu_custom_call.1} parent=51 // pred_fallthru
          _
        %s348 = sand.u32 %s40, 1
        %s349 = scalar_lea.sflag [#allocation5], %s348
        %s350 = sand.u32 %s40, 1
        %s351 = smul.addr %s350, 4
        %s352 = scalar_lea.vmem [#allocation4], %s351
        %p353 = pneg %p53
        %p354 = pneg %p50
        %p355 = pneg %p74
        %p356 = pneg %p71
        %p357 = pneg %p95
        %p358 = pneg %p92
        %p359 = pneg %p116
        %p360 = pneg %p113
        %p361 = pneg %p137
        %p362 = pneg %p134
        %p363 = pneg %p158
        %p364 = pneg %p155
        %p365 = pneg %p179
        %p366 = pneg %p176
        %p367 = pneg %p200
        %p368 = pneg %p197
        %p369 = pneg %p226
        %p370 = pneg %p223
        %s371 = sand.u32 %s213, 1
        %s372 = scalar_lea.sflag [#allocation6], %s371
        %s373 = sand.u32 %s213, 1
        %s374 = smul.addr %s373, 8
        %s375 = scalar_lea.vmem [#allocation13], %s374
        %s376 = sld [smem:[#allocation3 + %s32]]
        %v377 = vlaneseq
        %v378 = vand.u32 %v377, 127
        %v379 = vstv %s376
        %vm380 = vcmp.lt.s32.totalorder %v378, %v379
        %vm381 = vcmp.ge.s32.totalorder %v378, 4
        %vm382 = vcmp.lt.s32.totalorder %v378, 132
        %vm383 = vmand %vm381, %vm382
        %vm384 = vcmp.ge.s32.totalorder %v378, 3
        %vm385 = vcmp.lt.s32.totalorder %v378, 131
        %vm386 = vmand %vm384, %vm385
        %vm387 = vcmp.ge.s32.totalorder %v378, 2
        %vm388 = vcmp.lt.s32.totalorder %v378, 130
        %vm389 = vmand %vm387, %vm388
        %vm390 = vcmp.ge.s32.totalorder %v378, 1
        %vm391 = vcmp.lt.s32.totalorder %v378, 129
        %vm392 = vmand %vm390, %vm391
        %vm393 = vcmp.ge.s32.totalorder %v378, 0
        %vm394 = vcmp.lt.s32.totalorder %v378, 128
        %vm395 = vmand %vm393, %vm394
        %vm396 = vcmp.ge.s32.totalorder %v378, 4294967295
        %vm397 = vcmp.lt.s32.totalorder %v378, 127
        %vm398 = vmand %vm396, %vm397
        %vm399 = vcmp.ge.s32.totalorder %v378, 4294967294
        %vm400 = vcmp.lt.s32.totalorder %v378, 126
        %vm401 = vmand %vm399, %vm400
        %vm402 = vcmp.ge.s32.totalorder %v378, 4294967293
        %vm403 = vcmp.lt.s32.totalorder %v378, 125
        %vm404 = vmand %vm402, %vm403
        %vm405 = vcmp.ge.s32.totalorder %v378, 4294967292
        %vm406 = vcmp.lt.s32.totalorder %v378, 124
        %vm407 = vmand %vm405, %vm406
        %v408 = vld [vmem:[%s327] sm:$0xf]
        %v409 = vld [vmem:[#allocation7] sm:$0xf]
        %v410 = vld [vmem:[#allocation9] sm:$0xf]
        %411 = vrot.lane.b32.xlu0 %v408, 4
        %v412 = vpop.permute.xlu0 %411
        %414 = vset.pattern.permute.xlu0 0
        %415 = vperm.xlu0 %414, %v409
        %v416 = vpop.permute.xlu0 %415
        %v418 = vmul.f32 %v412, %v416
        %v419 = vsel %vm383, 1, 0
        %vm420 = vcmp.eq.s32.totalorder %v419, 1
        %v421 = vsel %vm420, %v418, 0.0
        %v422 = vadd.f32 %v421, 0.0
        %423 = vrot.lane.b32.xlu0 %v408, 3
        %v424 = vpop.permute.xlu0 %423
        %425 = vset.pattern.permute.xlu0 1
        %426 = vperm.xlu0 %425, %v409
        %v427 = vpop.permute.xlu0 %426
        %v429 = vmul.f32 %v424, %v427
        %v430 = vsel %vm386, 1, 0
        %vm431 = vcmp.eq.s32.totalorder %v430, 1
        %v432 = vsel %vm431, %v429, 0.0
        %v433 = vadd.f32 %v422, %v432
        %434 = vrot.lane.b32.xlu0 %v408, 2
        %v435 = vpop.permute.xlu0 %434
        %436 = vset.pattern.permute.xlu0 2
        %437 = vperm.xlu0 %436, %v409
        %v438 = vpop.permute.xlu0 %437
        %v440 = vmul.f32 %v435, %v438
        %v441 = vsel %vm389, 1, 0
        %vm442 = vcmp.eq.s32.totalorder %v441, 1
        %v443 = vsel %vm442, %v440, 0.0
        %v444 = vadd.f32 %v433, %v443
        %445 = vrot.lane.b32.xlu0 %v408, 1
        %v446 = vpop.permute.xlu0 %445
        %447 = vset.pattern.permute.xlu0 3
        %448 = vperm.xlu0 %447, %v409
        %v449 = vpop.permute.xlu0 %448
        %v451 = vmul.f32 %v446, %v449
        %v452 = vsel %vm392, 1, 0
        %vm453 = vcmp.eq.s32.totalorder %v452, 1
        %v454 = vsel %vm453, %v451, 0.0
        %v455 = vadd.f32 %v444, %v454
        %456 = vset.pattern.permute.xlu0 4
        %457 = vperm.xlu0 %456, %v409
        %v458 = vpop.permute.xlu0 %457
        %v460 = vmul.f32 %v408, %v458
        %v461 = vsel %vm395, 1, 0
        %vm462 = vcmp.eq.s32.totalorder %v461, 1
        %v463 = vsel %vm462, %v460, 0.0
        %v464 = vadd.f32 %v455, %v463
        %465 = vrot.lane.b32.xlu0 %v408, 127
        %v466 = vpop.permute.xlu0 %465
        %467 = vset.pattern.permute.xlu0 5
        %468 = vperm.xlu0 %467, %v409
        %v469 = vpop.permute.xlu0 %468
        %v471 = vmul.f32 %v466, %v469
        %v472 = vsel %vm398, 1, 0
        %vm473 = vcmp.eq.s32.totalorder %v472, 1
        %v474 = vsel %vm473, %v471, 0.0
        %v475 = vadd.f32 %v464, %v474
        %476 = vrot.lane.b32.xlu0 %v408, 126
        %v477 = vpop.permute.xlu0 %476
        %478 = vset.pattern.permute.xlu0 6
        %479 = vperm.xlu0 %478, %v409
        %v480 = vpop.permute.xlu0 %479
        %v482 = vmul.f32 %v477, %v480
        %v483 = vsel %vm401, 1, 0
        %vm484 = vcmp.eq.s32.totalorder %v483, 1
        %v485 = vsel %vm484, %v482, 0.0
        %v486 = vadd.f32 %v475, %v485
        %487 = vrot.lane.b32.xlu0 %v408, 125
        %v488 = vpop.permute.xlu0 %487
        %489 = vset.pattern.permute.xlu0 7
        %490 = vperm.xlu0 %489, %v409
        %v491 = vpop.permute.xlu0 %490
        %v493 = vmul.f32 %v488, %v491
        %v494 = vsel %vm404, 1, 0
        %vm495 = vcmp.eq.s32.totalorder %v494, 1
        %v496 = vsel %vm495, %v493, 0.0
        %v497 = vadd.f32 %v486, %v496
        %498 = vrot.lane.b32.xlu0 %v408, 124
        %v499 = vpop.permute.xlu0 %498
        %500 = vset.pattern.permute.xlu0 8
        %501 = vperm.xlu0 %500, %v409
        %v502 = vpop.permute.xlu0 %501
        %v504 = vmul.f32 %v499, %v502
        %v505 = vsel %vm407, 1, 0
        %vm506 = vcmp.eq.s32.totalorder %v505, 1
        %v507 = vsel %vm506, %v504, 0.0
        %v508 = vadd.f32 %v497, %v507
        %509 = vset.pattern.permute.xlu0 9
        %510 = vperm.xlu0 %509, %v409
        %v511 = vpop.permute.xlu0 %510
        %v513 = vadd.f32 %v508, %v511
        %515 = vset.pattern.permute.xlu0 0
        %516 = vperm.xlu0 %515, %v410
        %v517 = vpop.permute.xlu0 %516
        %v519 = vlaneseq
        %v520 = vshrl.u32 %v519, 7
        %v521 = vsub.s32 0, %v520
        %v522 = vrot.slane %v513, %v521
        %v523 = vmul.f32 %v517, %v522
        %v524 = vadd.f32 %v523, 0.0
        %525 = vset.pattern.permute.xlu0 1
        %526 = vperm.xlu0 %525, %v410
        %v527 = vpop.permute.xlu0 %526
        %v529 = vlaneseq
        %v530 = vshrl.u32 %v529, 7
        %v531 = vsub.s32 1, %v530
        %v532 = vrot.slane %v513, %v531
        %v533 = vmul.f32 %v527, %v532
        %v534 = vadd.f32 %v524, %v533
        %535 = vset.pattern.permute.xlu0 2
        %536 = vperm.xlu0 %535, %v410
        %v537 = vpop.permute.xlu0 %536
        %v539 = vlaneseq
        %v540 = vshrl.u32 %v539, 7
        %v541 = vsub.s32 2, %v540
        %v542 = vrot.slane %v513, %v541
        %v543 = vmul.f32 %v537, %v542
        %v544 = vadd.f32 %v534, %v543
        %545 = vset.pattern.permute.xlu0 3
        %546 = vperm.xlu0 %545, %v410
        %v547 = vpop.permute.xlu0 %546
        %v549 = vlaneseq
        %v550 = vshrl.u32 %v549, 7
        %v551 = vsub.s32 3, %v550
        %v552 = vrot.slane %v513, %v551
        %v553 = vmul.f32 %v547, %v552
        %v554 = vadd.f32 %v544, %v553
        %555 = vset.pattern.permute.xlu0 4
        %556 = vperm.xlu0 %555, %v410
        %v557 = vpop.permute.xlu0 %556
        %v559 = vadd.f32 %v554, %v557
        %v560 = vsel %vm380, 1, 0
        %vm561 = vcmp.eq.s32.totalorder %v560, 1
        %562 = vset.pattern.permute.xlu0 5
        %563 = vperm.xlu0 %562, %v410
        %v564 = vpop.permute.xlu0 %563
        %v566 = vsel %vm561, %v559, %v564
        %v567 = vld [vmem:[#allocation10] sm:$0xf]
        %v568 = vld [vmem:[#allocation12] sm:$0xf]
        %569 = vrot.lane.b32.xlu0 %v566, 4
        %v570 = vpop.permute.xlu0 %569
        %572 = vset.pattern.permute.xlu0 0
        %573 = vperm.xlu0 %572, %v567
        %v574 = vpop.permute.xlu0 %573
        %v576 = vmul.f32 %v570, %v574
        %v577 = vsel %vm420, %v576, 0.0
        %v578 = vadd.f32 %v577, 0.0
        %579 = vrot.lane.b32.xlu0 %v566, 3
        %v580 = vpop.permute.xlu0 %579
        %581 = vset.pattern.permute.xlu0 1
        %582 = vperm.xlu0 %581, %v567
        %v583 = vpop.permute.xlu0 %582
        %v585 = vmul.f32 %v580, %v583
        %v586 = vsel %vm431, %v585, 0.0
        %v587 = vadd.f32 %v578, %v586
        %588 = vrot.lane.b32.xlu0 %v566, 2
        %v589 = vpop.permute.xlu0 %588
        %590 = vset.pattern.permute.xlu0 2
        %591 = vperm.xlu0 %590, %v567
        %v592 = vpop.permute.xlu0 %591
        %v594 = vmul.f32 %v589, %v592
        %v595 = vsel %vm442, %v594, 0.0
        %v596 = vadd.f32 %v587, %v595
        %597 = vrot.lane.b32.xlu0 %v566, 1
        %v598 = vpop.permute.xlu0 %597
        %599 = vset.pattern.permute.xlu0 3
        %600 = vperm.xlu0 %599, %v567
        %v601 = vpop.permute.xlu0 %600
        %v603 = vmul.f32 %v598, %v601
        %v604 = vsel %vm453, %v603, 0.0
        %v605 = vadd.f32 %v596, %v604
        %606 = vset.pattern.permute.xlu0 4
        %607 = vperm.xlu0 %606, %v567
        %v608 = vpop.permute.xlu0 %607
        %v610 = vmul.f32 %v566, %v608
        %v611 = vsel %vm462, %v610, 0.0
        %v612 = vadd.f32 %v605, %v611
        %613 = vrot.lane.b32.xlu0 %v566, 127
        %v614 = vpop.permute.xlu0 %613
        %615 = vset.pattern.permute.xlu0 5
        %616 = vperm.xlu0 %615, %v567
        %v617 = vpop.permute.xlu0 %616
        %v619 = vmul.f32 %v614, %v617
        %v620 = vsel %vm473, %v619, 0.0
        %v621 = vadd.f32 %v612, %v620
        %622 = vrot.lane.b32.xlu0 %v566, 126
        %v623 = vpop.permute.xlu0 %622
        %624 = vset.pattern.permute.xlu0 6
        %625 = vperm.xlu0 %624, %v567
        %v626 = vpop.permute.xlu0 %625
        %v628 = vmul.f32 %v623, %v626
        %v629 = vsel %vm484, %v628, 0.0
        %v630 = vadd.f32 %v621, %v629
        %631 = vrot.lane.b32.xlu0 %v566, 125
        %v632 = vpop.permute.xlu0 %631
        %633 = vset.pattern.permute.xlu0 7
        %634 = vperm.xlu0 %633, %v567
        %v635 = vpop.permute.xlu0 %634
        %v637 = vmul.f32 %v632, %v635
        %v638 = vsel %vm495, %v637, 0.0
        %v639 = vadd.f32 %v630, %v638
        %640 = vrot.lane.b32.xlu0 %v566, 124
        %v641 = vpop.permute.xlu0 %640
        %642 = vset.pattern.permute.xlu0 8
        %643 = vperm.xlu0 %642, %v567
        %v644 = vpop.permute.xlu0 %643
        %v646 = vmul.f32 %v641, %v644
        %v647 = vsel %vm506, %v646, 0.0
        %v648 = vadd.f32 %v639, %v647
        %649 = vset.pattern.permute.xlu0 9
        %650 = vperm.xlu0 %649, %v567
        %v651 = vpop.permute.xlu0 %650
        %v653 = vadd.f32 %v648, %v651
        %655 = vset.pattern.permute.xlu0 0
        %656 = vperm.xlu0 %655, %v568
        %v657 = vpop.permute.xlu0 %656
        %v659 = vlaneseq
        %v660 = vshrl.u32 %v659, 7
        %v661 = vsub.s32 0, %v660
        %v662 = vrot.slane %v653, %v661
        %v663 = vmul.f32 %v657, %v662
        %v664 = vadd.f32 %v663, 0.0
        %665 = vset.pattern.permute.xlu0 1
        %666 = vperm.xlu0 %665, %v568
        %v667 = vpop.permute.xlu0 %666
        %v669 = vlaneseq
        %v670 = vshrl.u32 %v669, 7
        %v671 = vsub.s32 1, %v670
        %v672 = vrot.slane %v653, %v671
        %v673 = vmul.f32 %v667, %v672
        %v674 = vadd.f32 %v664, %v673
        %675 = vset.pattern.permute.xlu0 2
        %676 = vperm.xlu0 %675, %v568
        %v677 = vpop.permute.xlu0 %676
        %v679 = vlaneseq
        %v680 = vshrl.u32 %v679, 7
        %v681 = vsub.s32 2, %v680
        %v682 = vrot.slane %v653, %v681
        %v683 = vmul.f32 %v677, %v682
        %v684 = vadd.f32 %v674, %v683
        %685 = vset.pattern.permute.xlu0 3
        %686 = vperm.xlu0 %685, %v568
        %v687 = vpop.permute.xlu0 %686
        %v689 = vlaneseq
        %v690 = vshrl.u32 %v689, 7
        %v691 = vsub.s32 3, %v690
        %v692 = vrot.slane %v653, %v691
        %v693 = vmul.f32 %v687, %v692
        %v694 = vadd.f32 %v684, %v693
        %695 = vset.pattern.permute.xlu0 4
        %696 = vperm.xlu0 %695, %v568
        %v697 = vpop.permute.xlu0 %696
        %v699 = vadd.f32 %v694, %v697
        %700 = vset.pattern.permute.xlu0 5
        %701 = vperm.xlu0 %700, %v568
        %v702 = vpop.permute.xlu0 %701
        %v704 = vsel %vm561, %v699, %v702
        %v705 = vld [vmem:[%s6] sm:$0xf]
        %v706 = vld [vmem:[%s7] sm:$0xff]
        %707 = vrot.lane.b32.xlu0 %v704, 4
        %v708 = vpop.permute.xlu0 %707
        %710 = vset.pattern.permute.xlu0 0
        %711 = vperm.xlu0 %710, %v705
        %v712 = vpop.permute.xlu0 %711
        %v714 = vmul.f32 %v708, %v712
        %v715 = vsel %vm420, %v714, 0.0
        %v716 = vadd.f32 %v715, 0.0
        %717 = vrot.lane.b32.xlu0 %v704, 3
        %v718 = vpop.permute.xlu0 %717
        %719 = vset.pattern.permute.xlu0 1
        %720 = vperm.xlu0 %719, %v705
        %v721 = vpop.permute.xlu0 %720
        %v723 = vmul.f32 %v718, %v721
        %v724 = vsel %vm431, %v723, 0.0
        %v725 = vadd.f32 %v716, %v724
        %726 = vrot.lane.b32.xlu0 %v704, 2
        %v727 = vpop.permute.xlu0 %726
        %728 = vset.pattern.permute.xlu0 2
        %729 = vperm.xlu0 %728, %v705
        %v730 = vpop.permute.xlu0 %729
        %v732 = vmul.f32 %v727, %v730
        %v733 = vsel %vm442, %v732, 0.0
        %v734 = vadd.f32 %v725, %v733
        %735 = vrot.lane.b32.xlu0 %v704, 1
        %v736 = vpop.permute.xlu0 %735
        %737 = vset.pattern.permute.xlu0 3
        %738 = vperm.xlu0 %737, %v705
        %v739 = vpop.permute.xlu0 %738
        %v741 = vmul.f32 %v736, %v739
        %v742 = vsel %vm453, %v741, 0.0
        %v743 = vadd.f32 %v734, %v742
        %744 = vset.pattern.permute.xlu0 4
        %745 = vperm.xlu0 %744, %v705
        %v746 = vpop.permute.xlu0 %745
        %v748 = vmul.f32 %v704, %v746
        %v749 = vsel %vm462, %v748, 0.0
        %v750 = vadd.f32 %v743, %v749
        %751 = vrot.lane.b32.xlu0 %v704, 127
        %v752 = vpop.permute.xlu0 %751
        %753 = vset.pattern.permute.xlu0 5
        %754 = vperm.xlu0 %753, %v705
        %v755 = vpop.permute.xlu0 %754
        %v757 = vmul.f32 %v752, %v755
        %v758 = vsel %vm473, %v757, 0.0
        %v759 = vadd.f32 %v750, %v758
        %760 = vrot.lane.b32.xlu0 %v704, 126
        %v761 = vpop.permute.xlu0 %760
        %762 = vset.pattern.permute.xlu0 6
        %763 = vperm.xlu0 %762, %v705
        %v764 = vpop.permute.xlu0 %763
        %v766 = vmul.f32 %v761, %v764
        %v767 = vsel %vm484, %v766, 0.0
        %v768 = vadd.f32 %v759, %v767
        %769 = vrot.lane.b32.xlu0 %v704, 125
        %v770 = vpop.permute.xlu0 %769
        %771 = vset.pattern.permute.xlu0 7
        %772 = vperm.xlu0 %771, %v705
        %v773 = vpop.permute.xlu0 %772
        %v775 = vmul.f32 %v770, %v773
        %v776 = vsel %vm495, %v775, 0.0
        %v777 = vadd.f32 %v768, %v776
        %778 = vrot.lane.b32.xlu0 %v704, 124
        %v779 = vpop.permute.xlu0 %778
        %780 = vset.pattern.permute.xlu0 8
        %781 = vperm.xlu0 %780, %v705
        %v782 = vpop.permute.xlu0 %781
        %v784 = vmul.f32 %v779, %v782
        %v785 = vsel %vm506, %v784, 0.0
        %v786 = vadd.f32 %v777, %v785
        %787 = vset.pattern.permute.xlu0 9
        %788 = vperm.xlu0 %787, %v705
        %v789 = vpop.permute.xlu0 %788
        %v791 = vadd.f32 %v786, %v789
        %793 = vset.pattern.permute.xlu0 0
        %794 = vperm.xlu0 %793, %v706
        %v795 = vpop.permute.xlu0 %794
        %v797 = vlaneseq
        %v798 = vshrl.u32 %v797, 7
        %v799 = vsub.s32 0, %v798
        %v800 = vrot.slane %v791, %v799
        %v801 = vmul.f32 %v795, %v800
        %v802 = vadd.f32 %v801, 0.0
        %803 = vset.pattern.permute.xlu0 1
        %804 = vperm.xlu0 %803, %v706
        %v805 = vpop.permute.xlu0 %804
        %v807 = vlaneseq
        %v808 = vshrl.u32 %v807, 7
        %v809 = vsub.s32 1, %v808
        %v810 = vrot.slane %v791, %v809
        %v811 = vmul.f32 %v805, %v810
        %v812 = vadd.f32 %v802, %v811
        %813 = vset.pattern.permute.xlu0 2
        %814 = vperm.xlu0 %813, %v706
        %v815 = vpop.permute.xlu0 %814
        %v817 = vlaneseq
        %v818 = vshrl.u32 %v817, 7
        %v819 = vsub.s32 2, %v818
        %v820 = vrot.slane %v791, %v819
        %v821 = vmul.f32 %v815, %v820
        %v822 = vadd.f32 %v812, %v821
        %823 = vset.pattern.permute.xlu0 3
        %824 = vperm.xlu0 %823, %v706
        %v825 = vpop.permute.xlu0 %824
        %v827 = vlaneseq
        %v828 = vshrl.u32 %v827, 7
        %v829 = vsub.s32 3, %v828
        %v830 = vrot.slane %v791, %v829
        %v831 = vmul.f32 %v825, %v830
        %v832 = vadd.f32 %v822, %v831
        %833 = vset.pattern.permute.xlu0 4
        %834 = vperm.xlu0 %833, %v706
        %v835 = vpop.permute.xlu0 %834
        %v837 = vadd.f32 %v832, %v835
        %838 = vset.pattern.permute.xlu0 5
        %839 = vperm.xlu0 %838, %v706
        %v840 = vpop.permute.xlu0 %839
        %v842 = vsel %vm561, %v837, %v840
        %v843 = vld [vmem:[%s8] sm:$0xff]
        %845 = vset.pattern.permute.xlu0 0
        %846 = vperm.xlu0 %845, %v843
        %v847 = vpop.permute.xlu0 %846
        %v849 = vlaneseq
        %v850 = vshrl.u32 %v849, 7
        %v851 = vsub.s32 0, %v850
        %v852 = vrot.slane %v408, %v851
        %v853 = vmul.f32 %v847, %v852
        %v854 = vadd.f32 %v853, 0.0
        %855 = vset.pattern.permute.xlu0 1
        %856 = vperm.xlu0 %855, %v843
        %v857 = vpop.permute.xlu0 %856
        %v859 = vlaneseq
        %v860 = vshrl.u32 %v859, 7
        %v861 = vsub.s32 1, %v860
        %v862 = vrot.slane %v408, %v861
        %v863 = vmul.f32 %v857, %v862
        %v864 = vadd.f32 %v854, %v863
        %865 = vset.pattern.permute.xlu0 2
        %866 = vperm.xlu0 %865, %v843
        %v867 = vpop.permute.xlu0 %866
        %v869 = vlaneseq
        %v870 = vshrl.u32 %v869, 7
        %v871 = vsub.s32 2, %v870
        %v872 = vrot.slane %v408, %v871
        %v873 = vmul.f32 %v867, %v872
        %v874 = vadd.f32 %v864, %v873
        %875 = vset.pattern.permute.xlu0 3
        %876 = vperm.xlu0 %875, %v843
        %v877 = vpop.permute.xlu0 %876
        %v879 = vlaneseq
        %v880 = vshrl.u32 %v879, 7
        %v881 = vsub.s32 3, %v880
        %v882 = vrot.slane %v408, %v881
        %v883 = vmul.f32 %v877, %v882
        %v884 = vadd.f32 %v874, %v883
        %885 = vset.pattern.permute.xlu0 4
        %886 = vperm.xlu0 %885, %v843
        %v887 = vpop.permute.xlu0 %886
        %v889 = vadd.f32 %v884, %v887
        %v890 = vadd.f32 %v842, %v889
        %v891 = vmax.f32 %v890, 0.0
        %892 = vst [vmem:[%s375] sm:$0xff] %v891
        %s893 = sand.u32 %s213, 1
        %s894 = scalar_lea.sflag [#allocation6], %s893
        %s895 = sand.u32 %s213, 1
        %s896 = smul.addr %s895, 8
        %s897 = scalar_lea.vmem [#allocation13], %s896
        // Predicated region
        $region73: #{tpu_custom_call.1} parent=51 // pred_check
          %p898 = pneg %p223
        $region74: #{tpu_custom_call.1} parent=51 // pred_check_branch
          %900 = sbr.rel (%p898) target = $region76
        $region75: #{tpu_custom_call.1} parent=51 // pred_region
          %s902 = ssub.s32 128, 128
          %903 = vsyncadd %s894, %s902
          %s904 = smul.addr %s32, 128
          %s905 = scalar_lea.hbm %s9, %s904
          %s907 = sshll.u32 %s897, 4
          %s908 = int_to_ptr.vmem [resolvable:$true] %s907
          %910 = dma.vmem_to_hbm [thread:$0]  %s908, 128, %s905, %s894
        $region76: #{tpu_custom_call.1} parent=51 // pred_fallthru
          _
      $region52: #{tpu_custom_call.1} parent=5 // pred_fallthru
        _
      %p911 = scmp.le.s32.totalorder 2, %s27
      // Predicated region
      $region77: #{tpu_custom_call.1} parent=5 // pred_check
        %p912 = pneg %p911
      $region78: #{tpu_custom_call.1} parent=5 // pred_check_branch
        %914 = sbr.rel (%p912) target = $region80
      $region79: #{tpu_custom_call.1} parent=5 // pred_region
        %s915 = ssub.s32 %s27, 2
        // Predicated region
        $region81: #{tpu_custom_call.1} parent=79 // pred_check
          %p916 = pneg %p229
        $region82: #{tpu_custom_call.1} parent=79 // pred_check_branch
          %918 = sbr.rel (%p916) target = $region84
        $region83: #{tpu_custom_call.1} parent=79 // pred_region
          %s919 = sand.u32 %s214, 1
          %s920 = scalar_lea.sflag [#allocation6], %s919
          %s921 = sand.u32 %s214, 1
          %s922 = smul.addr %s921, 8
          %s923 = scalar_lea.vmem [#allocation13], %s922
          %924 = dma.done %s920, 128
        $region84: #{tpu_custom_call.1} parent=79 // pred_fallthru
          _
      $region80: #{tpu_custom_call.1} parent=5 // pred_fallthru
        _
    $region6: #{tpu_custom_call.1} parent=1 // loop_footer
      %s31 = sadd.s32 1, %s27
    $region7: #{tpu_custom_call.1} parent=1 // loop_footer_branch
      %26 = sbr.rel target = $region3
    $region8: #{tpu_custom_call.1} parent=1 // loop_exit
      _
    %925 = vsyncpa [#allocation5], 1
    %s926 = scalar_lea.sflag [#allocation5], 1
    %927 = vsyncpa %s926, 1
    %928 = vsyncpa [#allocation8], 1
    %929 = vsyncpa [#allocation11], 1
    %930 = vsyncpa [#allocation6], 1
    %s931 = scalar_lea.sflag [#allocation6], 1
    %932 = vsyncpa %s931, 1

</llo_original>
